<compile_context>
chip_gen: v7x
topology: tpu7x:2x2x1
jax: 0.10.0
libtpu: 0.0.40
codegen_flags: <defaults>
</compile_context>

<pallas_src>
import math
from functools import partial

import jax
import jax.numpy as jnp
from jax import lax
from jax.experimental import pallas as pl
from jax.experimental.pallas import tpu as pltpu  # noqa: F401  (TPU backend extensions)

# ---- model hyperparameters (small, deterministic) ----
B = 2                 # batch
S = 8                 # sequence length
H = 32                # hidden_size
NUM_HEADS = 4         # num_attention_heads
HEAD_DIM = H // NUM_HEADS
INTERMEDIATE = 64     # intermediate_size
NUM_LAYERS = 2        # num_hidden_layers
LN_EPS = 1e-5
BS = B * S            # folded token rows (16)
HBS = NUM_HEADS * BS  # head-folded rows (64)
NEG_INF = -1e9
MXU_DTYPE = jnp.bfloat16          # MXU operand dtype; accumulation stays f32
INV_SQRT2 = 1.0 / math.sqrt(2.0)

PARAM_ORDER = ("wqkv", "bqkv", "wo", "bo", "g1", "be1",
               "wi", "bi", "wo2", "bo2", "g2", "be2")


# ----------------------------- shared math helpers -----------------------------
def _layer_norm(x, gamma, beta):
    # BertLayerNorm: biased variance over last axis, eps under the sqrt.
    u = jnp.mean(x, axis=-1, keepdims=True)
    s = jnp.mean((x - u) ** 2, axis=-1, keepdims=True)
    return gamma * ((x - u) * lax.rsqrt(s + LN_EPS)) + beta


def _erf_approx(x):
    # Abramowitz & Stegun 7.1.26 (max abs err ~1.5e-7). Uses only exp/mul/add/where,
    # all of which have native Mosaic lowerings (avoids relying on lax.erf in-kernel).
    sign = jnp.where(x < 0.0, -1.0, 1.0)
    a = jnp.abs(x)
    t = 1.0 / (1.0 + 0.3275911 * a)
    poly = ((((1.061405429 * t - 1.453152027) * t + 1.421413741) * t
             - 0.284496736) * t + 0.254829592) * t
    return sign * (1.0 - poly * jnp.exp(-a * a))


def _gelu_kernel(x):
    return x * 0.5 * (1.0 + _erf_approx(x * INV_SQRT2))


def _gelu_ref(x):
    # Exact erf-based gelu (matches the PyTorch reference implementation).
    return x * 0.5 * (1.0 + lax.erf(x * INV_SQRT2))


# ----------------------------- Pallas kernel -------------------------------
def bert_encoder_kernel(x_ref, mask_ref,
                        wqkv_ref, bqkv_ref, wo_ref, bo_ref, g1_ref, be1_ref,
                        wi_ref, bi_ref, wo2_ref, bo2_ref, g2_ref, be2_ref,
                        out_ref, *, output_all_layers):
    x = x_ref[...]            # (BS, H)  f32; batch folded into sublanes
    mask = mask_ref[...]      # (HBS, HBS) f32 additive mask (head & batch block-diag + key mask)

    # Static unroll over layers: all weights stay resident in VMEM (~50 KB) and the
    # hidden state never leaves the chip between layers.
    for l in range(NUM_LAYERS):
        x_mxu = x.astype(MXU_DTYPE)

        # ---- fused QKV projection: one MXU push (scale already folded into wq/bq) ----
        qkv = jnp.dot(x_mxu, wqkv_ref[l],
                      preferred_element_type=jnp.float32) + bqkv_ref[l]       # (BS, 3H) f32

        # ---- head-fold relayout: (BS, 3H) lanes -> (NUM_HEADS*BS, HEAD_DIM) rows ----
        def fold(base):
            return jnp.concatenate(
                [qkv[:, base + h * HEAD_DIM: base + (h + 1) * HEAD_DIM]
                 for h in range(NUM_HEADS)],
                axis=0).astype(MXU_DTYPE)

        qh = fold(0)          # (HBS, HEAD_DIM)
        kh = fold(H)
        vh = fold(2 * H)

        # ---- single fused attention over all heads & batch rows ----
        scores = lax.dot_general(qh, kh, (((1,), (1,)), ((), ())),
                                 preferred_element_type=jnp.float32) + mask    # (HBS, HBS)
        m = jnp.max(scores, axis=-1, keepdims=True)
        p = jnp.exp(scores - m)
        denom = jnp.sum(p, axis=-1, keepdims=True)
        ctx = jnp.dot(p.astype(MXU_DTYPE), vh,
                      preferred_element_type=jnp.float32)                      # (HBS, HEAD_DIM)
        # Normalize the small ctx tile (not the big probs tile); approx recip = EUP slot.
        ctx = ctx * pl.reciprocal(denom, approx=True)

        # ---- merge heads back and single output projection ----
        ctx = jnp.concatenate([ctx[h * BS:(h + 1) * BS, :] for h in range(NUM_HEADS)],
                              axis=1)                                          # (BS, H)
        attn = jnp.dot(ctx.astype(MXU_DTYPE), wo_ref[l],
                       preferred_element_type=jnp.float32) + bo_ref[l]

        # ---- BertSelfOutput: residual + LayerNorm (f32) ----
        attn = _layer_norm(attn + x, g1_ref[l], be1_ref[l])

        # ---- BertIntermediate: dense + gelu ----
        inter = _gelu_kernel(jnp.dot(attn.astype(MXU_DTYPE), wi_ref[l],
                                     preferred_element_type=jnp.float32) + bi_ref[l])

        # ---- BertOutput: dense + residual + LayerNorm ----
        out = jnp.dot(inter.astype(MXU_DTYPE), wo2_ref[l],
                      preferred_element_type=jnp.float32) + bo2_ref[l]
        x = _layer_norm(out + attn, g2_ref[l], be2_ref[l])

        if output_all_layers:
            out_ref[l] = x.astype(out_ref.dtype)       # per-layer encoder output

    if not output_all_layers:
        out_ref[...] = x.astype(out_ref.dtype)         # final layer only


# --------------------- one-time host-side parameter prep --------------------
def prepare_params(layer_params):
    """One-time prep (NOT on the per-call path):
       * fuse wq|wk|wv (and biases) into a single QKV projection,
       * fold the 1/sqrt(HEAD_DIM) attention scale into wq / bq,
       * stack every parameter over a leading layer axis,
       * cast matmul weights to bf16 (MXU operands); biases / LN params stay f32."""
    scale = 1.0 / math.sqrt(HEAD_DIM)
    per_layer = []
    for p in layer_params:
        per_layer.append(dict(
            wqkv=jnp.concatenate([p["wq"] * scale, p["wk"], p["wv"]], axis=1),
            bqkv=jnp.concatenate([p["bq"] * scale, p["bk"], p["bv"]], axis=1),
            wo=p["wo"], bo=p["bo"], g1=p["g1"], be1=p["be1"],
            wi=p["wi"], bi=p["bi"], wo2=p["wo2"], bo2=p["bo2"],
            g2=p["g2"], be2=p["be2"]))
    mxu_weights = ("wqkv", "wo", "wi", "wo2")
    stacked = {}
    for name in PARAM_ORDER:
        arr = jnp.stack([lp[name] for lp in per_layer], axis=0)
        stacked[name] = arr.astype(MXU_DTYPE if name in mxu_weights else jnp.float32)
    return stacked


# ------------------------------ host wrapper --------------------------------
def _build_fused_mask(attention_mask4d):
    """(B,1,1,S) additive mask -> (NUM_HEADS*B*S, NUM_HEADS*B*S) additive mask that is
    block-diagonal over heads AND batches (cross blocks get -1e9, so exp underflows to
    exactly 0), letting all heads/batches share one scores matmul + one softmax."""
    key_mask = attention_mask4d.reshape(BS).astype(jnp.float32)        # per-key additive mask
    batch_id = jnp.arange(BS) // S
    same_batch = batch_id[:, None] == batch_id[None, :]
    base = jnp.where(same_batch, key_mask[None, :], NEG_INF)           # (BS, BS)
    head_id = jnp.arange(HBS) // BS
    same_head = head_id[:, None] == head_id[None, :]
    return jnp.where(same_head, jnp.tile(base, (NUM_HEADS, NUM_HEADS)), NEG_INF)


@partial(jax.jit, static_argnames=("output_all_encoded_layers",))
def bert_encoder_pallas(hidden, attention_mask4d, stacked,
                        output_all_encoded_layers=True):
    """BertEncoder.forward (standard path, no history states) as one fused Pallas call."""
    Bq, Sq, Hq = hidden.shape
    x2d = hidden.reshape(Bq * Sq, Hq).astype(jnp.float32)
    mask = _build_fused_mask(attention_mask4d)

    if output_all_encoded_layers:
        out_shape = jax.ShapeDtypeStruct((NUM_LAYERS, Bq * Sq, Hq), jnp.float32)
    else:
        # Only the final layer is stored -> fewer narrow (<128-lane) masked stores.
        out_shape = jax.ShapeDtypeStruct((Bq * Sq, Hq), jnp.float32)

    kernel = partial(bert_encoder_kernel, output_all_layers=output_all_encoded_layers)
    out = pl.pallas_call(kernel, out_shape=out_shape)(
        x2d, mask, *[stacked[name] for name in PARAM_ORDER])

    if output_all_encoded_layers:
        return [out[l].reshape(Bq, Sq, Hq) for l in range(NUM_LAYERS)]
    return [out.reshape(Bq, Sq, Hq)]


# --------------------------- parameter creation -----------------------------
def init_params(key):
    """Deterministic synthetic parameters. Linear weights stored as (in, out)."""
    layers = []
    for _ in range(NUM_LAYERS):
        def nxt():
            nonlocal key
            key, sub = jax.random.split(key)
            return sub

        def lin(din, dout):
            w = 0.02 * jax.random.normal(nxt(), (din, dout), jnp.float32)
            b = 0.02 * jax.random.normal(nxt(), (1, dout), jnp.float32)
            return w, b

        wq, bq = lin(H, H)
        wk, bk = lin(H, H)
        wv, bv = lin(H, H)
        wo, bo = lin(H, H)
        wi, bi = lin(H, INTERMEDIATE)
        wo2, bo2 = lin(INTERMEDIATE, H)
        layers.append(dict(
            wq=wq, bq=bq, wk=wk, bk=bk, wv=wv, bv=bv,
            wo=wo, bo=bo,
            g1=jnp.ones((1, H), jnp.float32), be1=jnp.zeros((1, H), jnp.float32),
            wi=wi, bi=bi, wo2=wo2, bo2=bo2,
            g2=jnp.ones((1, H), jnp.float32), be2=jnp.zeros((1, H), jnp.float32),
        ))
    return layers


# ----------------------- pure-JAX reference (for check) ---------------------
def _ref_layer(x, mask4d, p):
    q = x @ p["wq"] + p["bq"]
    k = x @ p["wk"] + p["bk"]
    v = x @ p["wv"] + p["bv"]

    def split_heads(t):
        return t.reshape(B, S, NUM_HEADS, HEAD_DIM).transpose(0, 2, 1, 3)

    qh, kh, vh = split_heads(q), split_heads(k), split_heads(v)
    scores = jnp.einsum("bhqd,bhkd->bhqk", qh, kh) / math.sqrt(HEAD_DIM)
    scores = scores + mask4d
    probs = jax.nn.softmax(scores, axis=-1)
    ctx = jnp.einsum("bhqk,bhkd->bhqd", probs, vh)
    ctx = ctx.transpose(0, 2, 1, 3).reshape(B, S, H)

    attn = ctx @ p["wo"] + p["bo"]
    attn = _layer_norm(attn + x, p["g1"], p["be1"])
    inter = _gelu_ref(attn @ p["wi"] + p["bi"])
    out = inter @ p["wo2"] + p["bo2"]
    return _layer_norm(out + attn, p["g2"], p["be2"])


def bert_encoder_ref(hidden, mask4d, layer_params):
    all_layers = []
    for p in layer_params:
        hidden = _ref_layer(hidden, mask4d, p)
        all_layers.append(hidden)
    return all_layers


# --------------------------------- main -------------------------------------
if __name__ == "__main__":
    key = jax.random.PRNGKey(0)
    key, k_h = jax.random.split(key)
    hidden_states = jax.random.normal(k_h, (B, S, H), jnp.float32)

    # Additive attention mask (B, 1, 1, S): batch 0 fully valid, batch 1 has its
    # last two positions masked out.
    valid = jnp.array([[1.0] * S, [1.0] * (S - 2) + [0.0] * 2], jnp.float32)
    attention_mask = (1.0 - valid)[:, None, None, :] * -10000.0

    params = init_params(key)
    stacked = prepare_params(params)      # one-time: stack / fuse QKV / fold scale / bf16

    refs = bert_encoder_ref(hidden_states, attention_mask, params)

    # Tolerance covers bf16 MXU operands (f32 accumulation) + approx EUP reciprocal
    # compounding over 2 layers; observed error is well below this bound.
    TOL = 2e-2

    outs = bert_encoder_pallas(hidden_states, attention_mask, stacked,
                               output_all_encoded_layers=True)
    outs = [jax.block_until_ready(o) for o in outs]
    for o, r in zip(outs, refs):
        max_err = float(jnp.max(jnp.abs(o - r)))
        assert max_err < TOL, f"mismatch vs reference: {max_err}"

    last = bert_encoder_pallas(hidden_states, attention_mask, stacked,
                               output_all_encoded_layers=False)
    last = [jax.block_until_ready(o) for o in last]
    max_err = float(jnp.max(jnp.abs(last[-1] - refs[-1])))
    assert max_err < TOL, f"mismatch vs reference (final-layer-only path): {max_err}"

    print("KERNEL_OK")
</pallas_src>

<mosaic_0001>
module attributes {stable_mosaic.version = 11 : i64} {
  func.func @bert_encoder_kernel(%arg0: memref<16x32xf32, #tpu.memory_space<vmem>>, %arg1: memref<64x64xf32, #tpu.memory_space<vmem>>, %arg2: memref<2x32x96xbf16, #tpu.memory_space<vmem>>, %arg3: memref<2x1x96xf32, #tpu.memory_space<vmem>>, %arg4: memref<2x32x32xbf16, #tpu.memory_space<vmem>>, %arg5: memref<2x1x32xf32, #tpu.memory_space<vmem>>, %arg6: memref<2x1x32xf32, #tpu.memory_space<vmem>>, %arg7: memref<2x1x32xf32, #tpu.memory_space<vmem>>, %arg8: memref<2x32x64xbf16, #tpu.memory_space<vmem>>, %arg9: memref<2x1x64xf32, #tpu.memory_space<vmem>>, %arg10: memref<2x64x32xbf16, #tpu.memory_space<vmem>>, %arg11: memref<2x1x32xf32, #tpu.memory_space<vmem>>, %arg12: memref<2x1x32xf32, #tpu.memory_space<vmem>>, %arg13: memref<2x1x32xf32, #tpu.memory_space<vmem>>, %arg14: memref<2x16x32xf32, #tpu.memory_space<vmem>>) attributes {dimension_semantics = [], scalar_prefetch = 0 : i64, scratch_operands = 0 : i64, tpu.core_type = #tpu.core_type<tc>} {
    %c0 = arith.constant 0 : index
    %c0_0 = arith.constant 0 : index
    %0 = vector.load %arg0[%c0, %c0_0] : memref<16x32xf32, #tpu.memory_space<vmem>>, vector<16x32xf32>
    %c0_1 = arith.constant 0 : index
    %c0_2 = arith.constant 0 : index
    %1 = vector.load %arg1[%c0_1, %c0_2] : memref<64x64xf32, #tpu.memory_space<vmem>>, vector<64x64xf32>
    %2 = arith.truncf %0 : vector<16x32xf32> to vector<16x32xbf16>
    %c0_3 = arith.constant 0 : index
    %c0_4 = arith.constant 0 : index
    %c0_5 = arith.constant 0 : index
    %3 = vector.load %arg2[%c0_3, %c0_4, %c0_5] : memref<2x32x96xbf16, #tpu.memory_space<vmem>>, vector<1x32x96xbf16>
    %4 = vector.shape_cast %3 : vector<1x32x96xbf16> to vector<32x96xbf16>
    %cst = arith.constant dense<0.000000e+00> : vector<16x96xf32>
    %5 = tpu.matmul %2, %4, %cst {dimension_numbers = #tpu.dot_dimension_numbers<[1], [0], [0], [1], [0, 0, 1, 1], [], []>} : vector<16x32xbf16>, vector<32x96xbf16>, vector<16x96xf32> -> vector<16x96xf32>
    %c0_6 = arith.constant 0 : index
    %c0_7 = arith.constant 0 : index
    %c0_8 = arith.constant 0 : index
    %6 = vector.load %arg3[%c0_6, %c0_7, %c0_8] : memref<2x1x96xf32, #tpu.memory_space<vmem>>, vector<1x1x96xf32>
    %7 = vector.shape_cast %6 : vector<1x1x96xf32> to vector<1x96xf32>
    %8 = vector.broadcast %7 : vector<1x96xf32> to vector<16x96xf32>
    %9 = arith.addf %5, %8 : vector<16x96xf32>
    %10 = vector.extract_strided_slice %9 {offsets = [0, 0], sizes = [16, 8], strides = [1, 1]} : vector<16x96xf32> to vector<16x8xf32>
    %11 = vector.extract_strided_slice %9 {offsets = [0, 8], sizes = [16, 8], strides = [1, 1]} : vector<16x96xf32> to vector<16x8xf32>
    %12 = vector.extract_strided_slice %9 {offsets = [0, 16], sizes = [16, 8], strides = [1, 1]} : vector<16x96xf32> to vector<16x8xf32>
    %13 = vector.extract_strided_slice %9 {offsets = [0, 24], sizes = [16, 8], strides = [1, 1]} : vector<16x96xf32> to vector<16x8xf32>
    %14 = tpu.concatenate %10, %11, %12, %13 in 0 : vector<16x8xf32>, vector<16x8xf32>, vector<16x8xf32>, vector<16x8xf32> -> vector<64x8xf32>
    %15 = arith.truncf %14 : vector<64x8xf32> to vector<64x8xbf16>
    %16 = vector.extract_strided_slice %9 {offsets = [0, 32], sizes = [16, 8], strides = [1, 1]} : vector<16x96xf32> to vector<16x8xf32>
    %17 = vector.extract_strided_slice %9 {offsets = [0, 40], sizes = [16, 8], strides = [1, 1]} : vector<16x96xf32> to vector<16x8xf32>
    %18 = vector.extract_strided_slice %9 {offsets = [0, 48], sizes = [16, 8], strides = [1, 1]} : vector<16x96xf32> to vector<16x8xf32>
    %19 = vector.extract_strided_slice %9 {offsets = [0, 56], sizes = [16, 8], strides = [1, 1]} : vector<16x96xf32> to vector<16x8xf32>
    %20 = tpu.concatenate %16, %17, %18, %19 in 0 : vector<16x8xf32>, vector<16x8xf32>, vector<16x8xf32>, vector<16x8xf32> -> vector<64x8xf32>
    %21 = arith.truncf %20 : vector<64x8xf32> to vector<64x8xbf16>
    %22 = vector.extract_strided_slice %9 {offsets = [0, 64], sizes = [16, 8], strides = [1, 1]} : vector<16x96xf32> to vector<16x8xf32>
    %23 = vector.extract_strided_slice %9 {offsets = [0, 72], sizes = [16, 8], strides = [1, 1]} : vector<16x96xf32> to vector<16x8xf32>
    %24 = vector.extract_strided_slice %9 {offsets = [0, 80], sizes = [16, 8], strides = [1, 1]} : vector<16x96xf32> to vector<16x8xf32>
    %25 = vector.extract_strided_slice %9 {offsets = [0, 88], sizes = [16, 8], strides = [1, 1]} : vector<16x96xf32> to vector<16x8xf32>
    %26 = tpu.concatenate %22, %23, %24, %25 in 0 : vector<16x8xf32>, vector<16x8xf32>, vector<16x8xf32>, vector<16x8xf32> -> vector<64x8xf32>
    %27 = arith.truncf %26 : vector<64x8xf32> to vector<64x8xbf16>
    %cst_9 = arith.constant dense<0.000000e+00> : vector<64x64xf32>
    %28 = tpu.matmul %15, %21, %cst_9 {dimension_numbers = #tpu.dot_dimension_numbers<[1], [1], [0], [0], [0, 0, 1, 0], [], []>} : vector<64x8xbf16>, vector<64x8xbf16>, vector<64x64xf32> -> vector<64x64xf32>
    %29 = arith.addf %28, %1 : vector<64x64xf32>
    %cst_10 = arith.constant dense<0xFF800000> : vector<64xf32>
    %30 = vector.multi_reduction <maximumf>, %29, %cst_10 [1] : vector<64x64xf32> to vector<64xf32>
    %31 = vector.shape_cast %30 : vector<64xf32> to vector<64x1xf32>
    %32 = vector.broadcast %31 : vector<64x1xf32> to vector<64x64xf32>
    %33 = arith.subf %29, %32 : vector<64x64xf32>
    %34 = math.exp %33 : vector<64x64xf32>
    %cst_11 = arith.constant dense<0.000000e+00> : vector<64xf32>
    %35 = vector.multi_reduction <add>, %34, %cst_11 [1] : vector<64x64xf32> to vector<64xf32>
    %36 = vector.shape_cast %35 : vector<64xf32> to vector<64x1xf32>
    %37 = arith.truncf %34 : vector<64x64xf32> to vector<64x64xbf16>
    %cst_12 = arith.constant dense<0.000000e+00> : vector<64x8xf32>
    %38 = tpu.matmul %37, %27, %cst_12 {dimension_numbers = #tpu.dot_dimension_numbers<[1], [0], [0], [1], [0, 0, 1, 1], [], []>} : vector<64x64xbf16>, vector<64x8xbf16>, vector<64x8xf32> -> vector<64x8xf32>
    %39 = tpu.reciprocal %36 {approx = true} : vector<64x1xf32> -> vector<64x1xf32>
    %40 = vector.broadcast %39 : vector<64x1xf32> to vector<64x8xf32>
    %41 = arith.mulf %38, %40 : vector<64x8xf32>
    %42 = vector.extract_strided_slice %41 {offsets = [0, 0], sizes = [16, 8], strides = [1, 1]} : vector<64x8xf32> to vector<16x8xf32>
    %43 = vector.extract_strided_slice %41 {offsets = [16, 0], sizes = [16, 8], strides = [1, 1]} : vector<64x8xf32> to vector<16x8xf32>
    %44 = vector.extract_strided_slice %41 {offsets = [32, 0], sizes = [16, 8], strides = [1, 1]} : vector<64x8xf32> to vector<16x8xf32>
    %45 = vector.extract_strided_slice %41 {offsets = [48, 0], sizes = [16, 8], strides = [1, 1]} : vector<64x8xf32> to vector<16x8xf32>
    %46 = tpu.concatenate %42, %43, %44, %45 in 1 : vector<16x8xf32>, vector<16x8xf32>, vector<16x8xf32>, vector<16x8xf32> -> vector<16x32xf32>
    %47 = arith.truncf %46 : vector<16x32xf32> to vector<16x32xbf16>
    %c0_13 = arith.constant 0 : index
    %c0_14 = arith.constant 0 : index
    %c0_15 = arith.constant 0 : index
    %48 = vector.load %arg4[%c0_13, %c0_14, %c0_15] : memref<2x32x32xbf16, #tpu.memory_space<vmem>>, vector<1x32x32xbf16>
    %49 = vector.shape_cast %48 : vector<1x32x32xbf16> to vector<32x32xbf16>
    %cst_16 = arith.constant dense<0.000000e+00> : vector<16x32xf32>
    %50 = tpu.matmul %47, %49, %cst_16 {dimension_numbers = #tpu.dot_dimension_numbers<[1], [0], [0], [1], [0, 0, 1, 1], [], []>} : vector<16x32xbf16>, vector<32x32xbf16>, vector<16x32xf32> -> vector<16x32xf32>
    %c0_17 = arith.constant 0 : index
    %c0_18 = arith.constant 0 : index
    %c0_19 = arith.constant 0 : index
    %51 = vector.load %arg5[%c0_17, %c0_18, %c0_19] : memref<2x1x32xf32, #tpu.memory_space<vmem>>, vector<1x1x32xf32>
    %52 = vector.shape_cast %51 : vector<1x1x32xf32> to vector<1x32xf32>
    %53 = vector.broadcast %52 : vector<1x32xf32> to vector<16x32xf32>
    %54 = arith.addf %50, %53 : vector<16x32xf32>
    %55 = arith.addf %54, %0 : vector<16x32xf32>
    %c0_20 = arith.constant 0 : index
    %c0_21 = arith.constant 0 : index
    %c0_22 = arith.constant 0 : index
    %56 = vector.load %arg6[%c0_20, %c0_21, %c0_22] : memref<2x1x32xf32, #tpu.memory_space<vmem>>, vector<1x1x32xf32>
    %57 = vector.shape_cast %56 : vector<1x1x32xf32> to vector<1x32xf32>
    %c0_23 = arith.constant 0 : index
    %c0_24 = arith.constant 0 : index
    %c0_25 = arith.constant 0 : index
    %58 = vector.load %arg7[%c0_23, %c0_24, %c0_25] : memref<2x1x32xf32, #tpu.memory_space<vmem>>, vector<1x1x32xf32>
    %59 = vector.shape_cast %58 : vector<1x1x32xf32> to vector<1x32xf32>
    %cst_26 = arith.constant dense<0.000000e+00> : vector<16xf32>
    %60 = vector.multi_reduction <add>, %55, %cst_26 [1] : vector<16x32xf32> to vector<16xf32>
    %61 = vector.shape_cast %60 : vector<16xf32> to vector<16x1xf32>
    %cst_27 = arith.constant 3.200000e+01 : f32
    %62 = vector.broadcast %cst_27 : f32 to vector<16x1xf32>
    %63 = arith.divf %61, %62 : vector<16x1xf32>
    %64 = vector.broadcast %63 : vector<16x1xf32> to vector<16x32xf32>
    %65 = arith.subf %55, %64 : vector<16x32xf32>
    %66 = arith.mulf %65, %65 : vector<16x32xf32>
    %cst_28 = arith.constant dense<0.000000e+00> : vector<16xf32>
    %67 = vector.multi_reduction <add>, %66, %cst_28 [1] : vector<16x32xf32> to vector<16xf32>
    %68 = vector.shape_cast %67 : vector<16xf32> to vector<16x1xf32>
    %cst_29 = arith.constant 3.200000e+01 : f32
    %69 = vector.broadcast %cst_29 : f32 to vector<16x1xf32>
    %70 = arith.divf %68, %69 : vector<16x1xf32>
    %71 = vector.broadcast %63 : vector<16x1xf32> to vector<16x32xf32>
    %72 = arith.subf %55, %71 : vector<16x32xf32>
    %cst_30 = arith.constant 9.99999974E-6 : f32
    %73 = vector.broadcast %cst_30 : f32 to vector<16x1xf32>
    %74 = arith.addf %70, %73 : vector<16x1xf32>
    %75 = math.rsqrt %74 : vector<16x1xf32>
    %76 = vector.broadcast %75 : vector<16x1xf32> to vector<16x32xf32>
    %77 = arith.mulf %72, %76 : vector<16x32xf32>
    %78 = vector.broadcast %57 : vector<1x32xf32> to vector<16x32xf32>
    %79 = arith.mulf %78, %77 : vector<16x32xf32>
    %80 = vector.broadcast %59 : vector<1x32xf32> to vector<16x32xf32>
    %81 = arith.addf %79, %80 : vector<16x32xf32>
    %82 = arith.truncf %81 : vector<16x32xf32> to vector<16x32xbf16>
    %c0_31 = arith.constant 0 : index
    %c0_32 = arith.constant 0 : index
    %c0_33 = arith.constant 0 : index
    %83 = vector.load %arg8[%c0_31, %c0_32, %c0_33] : memref<2x32x64xbf16, #tpu.memory_space<vmem>>, vector<1x32x64xbf16>
    %84 = vector.shape_cast %83 : vector<1x32x64xbf16> to vector<32x64xbf16>
    %cst_34 = arith.constant dense<0.000000e+00> : vector<16x64xf32>
    %85 = tpu.matmul %82, %84, %cst_34 {dimension_numbers = #tpu.dot_dimension_numbers<[1], [0], [0], [1], [0, 0, 1, 1], [], []>} : vector<16x32xbf16>, vector<32x64xbf16>, vector<16x64xf32> -> vector<16x64xf32>
    %c0_35 = arith.constant 0 : index
    %c0_36 = arith.constant 0 : index
    %c0_37 = arith.constant 0 : index
    %86 = vector.load %arg9[%c0_35, %c0_36, %c0_37] : memref<2x1x64xf32, #tpu.memory_space<vmem>>, vector<1x1x64xf32>
    %87 = vector.shape_cast %86 : vector<1x1x64xf32> to vector<1x64xf32>
    %88 = vector.broadcast %87 : vector<1x64xf32> to vector<16x64xf32>
    %89 = arith.addf %85, %88 : vector<16x64xf32>
    %cst_38 = arith.constant 5.000000e-01 : f32
    %90 = vector.broadcast %cst_38 : f32 to vector<16x64xf32>
    %91 = arith.mulf %89, %90 : vector<16x64xf32>
    %cst_39 = arith.constant 0.707106769 : f32
    %92 = vector.broadcast %cst_39 : f32 to vector<16x64xf32>
    %93 = arith.mulf %89, %92 : vector<16x64xf32>
    %cst_40 = arith.constant 0.000000e+00 : f32
    %94 = vector.broadcast %cst_40 : f32 to vector<16x64xf32>
    %95 = arith.cmpf olt, %93, %94 : vector<16x64xf32>
    %cst_41 = arith.constant -1.000000e+00 : f32
    %cst_42 = arith.constant 1.000000e+00 : f32
    %96 = vector.broadcast %cst_41 : f32 to vector<16x64xf32>
    %97 = vector.broadcast %cst_42 : f32 to vector<16x64xf32>
    %98 = arith.select %95, %96, %97 : vector<16x64xi1>, vector<16x64xf32>
    %99 = math.absf %93 : vector<16x64xf32>
    %cst_43 = arith.constant 0.327591091 : f32
    %100 = vector.broadcast %cst_43 : f32 to vector<16x64xf32>
    %101 = arith.mulf %100, %99 : vector<16x64xf32>
    %cst_44 = arith.constant 1.000000e+00 : f32
    %102 = vector.broadcast %cst_44 : f32 to vector<16x64xf32>
    %103 = arith.addf %102, %101 : vector<16x64xf32>
    %cst_45 = arith.constant 1.000000e+00 : f32
    %104 = vector.broadcast %cst_45 : f32 to vector<16x64xf32>
    %105 = arith.divf %104, %103 : vector<16x64xf32>
    %cst_46 = arith.constant 1.06140542 : f32
    %106 = vector.broadcast %cst_46 : f32 to vector<16x64xf32>
    %107 = arith.mulf %106, %105 : vector<16x64xf32>
    %cst_47 = arith.constant 1.45315206 : f32
    %108 = vector.broadcast %cst_47 : f32 to vector<16x64xf32>
    %109 = arith.subf %107, %108 : vector<16x64xf32>
    %110 = arith.mulf %109, %105 : vector<16x64xf32>
    %cst_48 = arith.constant 1.42141378 : f32
    %111 = vector.broadcast %cst_48 : f32 to vector<16x64xf32>
    %112 = arith.addf %110, %111 : vector<16x64xf32>
    %113 = arith.mulf %112, %105 : vector<16x64xf32>
    %cst_49 = arith.constant 0.284496725 : f32
    %114 = vector.broadcast %cst_49 : f32 to vector<16x64xf32>
    %115 = arith.subf %113, %114 : vector<16x64xf32>
    %116 = arith.mulf %115, %105 : vector<16x64xf32>
    %cst_50 = arith.constant 0.254829586 : f32
    %117 = vector.broadcast %cst_50 : f32 to vector<16x64xf32>
    %118 = arith.addf %116, %117 : vector<16x64xf32>
    %119 = arith.mulf %118, %105 : vector<16x64xf32>
    %cst_51 = arith.constant 0.000000e+00 : f32
    %120 = vector.broadcast %cst_51 : f32 to vector<16x64xf32>
    %121 = arith.subf %120, %99 : vector<16x64xf32>
    %122 = arith.mulf %121, %99 : vector<16x64xf32>
    %123 = math.exp %122 : vector<16x64xf32>
    %124 = arith.mulf %119, %123 : vector<16x64xf32>
    %cst_52 = arith.constant 1.000000e+00 : f32
    %125 = vector.broadcast %cst_52 : f32 to vector<16x64xf32>
    %126 = arith.subf %125, %124 : vector<16x64xf32>
    %127 = arith.mulf %98, %126 : vector<16x64xf32>
    %cst_53 = arith.constant 1.000000e+00 : f32
    %128 = vector.broadcast %cst_53 : f32 to vector<16x64xf32>
    %129 = arith.addf %128, %127 : vector<16x64xf32>
    %130 = arith.mulf %91, %129 : vector<16x64xf32>
    %131 = arith.truncf %130 : vector<16x64xf32> to vector<16x64xbf16>
    %c0_54 = arith.constant 0 : index
    %c0_55 = arith.constant 0 : index
    %c0_56 = arith.constant 0 : index
    %132 = vector.load %arg10[%c0_54, %c0_55, %c0_56] : memref<2x64x32xbf16, #tpu.memory_space<vmem>>, vector<1x64x32xbf16>
    %133 = vector.shape_cast %132 : vector<1x64x32xbf16> to vector<64x32xbf16>
    %cst_57 = arith.constant dense<0.000000e+00> : vector<16x32xf32>
    %134 = tpu.matmul %131, %133, %cst_57 {dimension_numbers = #tpu.dot_dimension_numbers<[1], [0], [0], [1], [0, 0, 1, 1], [], []>} : vector<16x64xbf16>, vector<64x32xbf16>, vector<16x32xf32> -> vector<16x32xf32>
    %c0_58 = arith.constant 0 : index
    %c0_59 = arith.constant 0 : index
    %c0_60 = arith.constant 0 : index
    %135 = vector.load %arg11[%c0_58, %c0_59, %c0_60] : memref<2x1x32xf32, #tpu.memory_space<vmem>>, vector<1x1x32xf32>
    %136 = vector.shape_cast %135 : vector<1x1x32xf32> to vector<1x32xf32>
    %137 = vector.broadcast %136 : vector<1x32xf32> to vector<16x32xf32>
    %138 = arith.addf %134, %137 : vector<16x32xf32>
    %139 = arith.addf %138, %81 : vector<16x32xf32>
    %c0_61 = arith.constant 0 : index
    %c0_62 = arith.constant 0 : index
    %c0_63 = arith.constant 0 : index
    %140 = vector.load %arg12[%c0_61, %c0_62, %c0_63] : memref<2x1x32xf32, #tpu.memory_space<vmem>>, vector<1x1x32xf32>
    %141 = vector.shape_cast %140 : vector<1x1x32xf32> to vector<1x32xf32>
    %c0_64 = arith.constant 0 : index
    %c0_65 = arith.constant 0 : index
    %c0_66 = arith.constant 0 : index
    %142 = vector.load %arg13[%c0_64, %c0_65, %c0_66] : memref<2x1x32xf32, #tpu.memory_space<vmem>>, vector<1x1x32xf32>
    %143 = vector.shape_cast %142 : vector<1x1x32xf32> to vector<1x32xf32>
    %cst_67 = arith.constant dense<0.000000e+00> : vector<16xf32>
    %144 = vector.multi_reduction <add>, %139, %cst_67 [1] : vector<16x32xf32> to vector<16xf32>
    %145 = vector.shape_cast %144 : vector<16xf32> to vector<16x1xf32>
    %cst_68 = arith.constant 3.200000e+01 : f32
    %146 = vector.broadcast %cst_68 : f32 to vector<16x1xf32>
    %147 = arith.divf %145, %146 : vector<16x1xf32>
    %148 = vector.broadcast %147 : vector<16x1xf32> to vector<16x32xf32>
    %149 = arith.subf %139, %148 : vector<16x32xf32>
    %150 = arith.mulf %149, %149 : vector<16x32xf32>
    %cst_69 = arith.constant dense<0.000000e+00> : vector<16xf32>
    %151 = vector.multi_reduction <add>, %150, %cst_69 [1] : vector<16x32xf32> to vector<16xf32>
    %152 = vector.shape_cast %151 : vector<16xf32> to vector<16x1xf32>
    %cst_70 = arith.constant 3.200000e+01 : f32
    %153 = vector.broadcast %cst_70 : f32 to vector<16x1xf32>
    %154 = arith.divf %152, %153 : vector<16x1xf32>
    %155 = vector.broadcast %147 : vector<16x1xf32> to vector<16x32xf32>
    %156 = arith.subf %139, %155 : vector<16x32xf32>
    %cst_71 = arith.constant 9.99999974E-6 : f32
    %157 = vector.broadcast %cst_71 : f32 to vector<16x1xf32>
    %158 = arith.addf %154, %157 : vector<16x1xf32>
    %159 = math.rsqrt %158 : vector<16x1xf32>
    %160 = vector.broadcast %159 : vector<16x1xf32> to vector<16x32xf32>
    %161 = arith.mulf %156, %160 : vector<16x32xf32>
    %162 = vector.broadcast %141 : vector<1x32xf32> to vector<16x32xf32>
    %163 = arith.mulf %162, %161 : vector<16x32xf32>
    %164 = vector.broadcast %143 : vector<1x32xf32> to vector<16x32xf32>
    %165 = arith.addf %163, %164 : vector<16x32xf32>
    %c0_72 = arith.constant 0 : index
    %c0_73 = arith.constant 0 : index
    %c0_74 = arith.constant 0 : index
    %166 = vector.load %arg14[%c0_72, %c0_73, %c0_74] : memref<2x16x32xf32, #tpu.memory_space<vmem>>, vector<1x16x32xf32>
    %167 = vector.shape_cast %166 : vector<1x16x32xf32> to vector<16x32xf32>
    %168 = vector.shape_cast %165 : vector<16x32xf32> to vector<1x16x32xf32>
    tpu.vector_store %arg14[%c0_72, %c0_73, %c0_74], %168 {strides = array<i32>} : memref<2x16x32xf32, #tpu.memory_space<vmem>>, vector<1x16x32xf32>,
    %169 = arith.truncf %165 : vector<16x32xf32> to vector<16x32xbf16>
    %c1 = arith.constant 1 : index
    %c0_75 = arith.constant 0 : index
    %c0_76 = arith.constant 0 : index
    %170 = vector.load %arg2[%c1, %c0_75, %c0_76] : memref<2x32x96xbf16, #tpu.memory_space<vmem>>, vector<1x32x96xbf16>
    %171 = vector.shape_cast %170 : vector<1x32x96xbf16> to vector<32x96xbf16>
    %cst_77 = arith.constant dense<0.000000e+00> : vector<16x96xf32>
    %172 = tpu.matmul %169, %171, %cst_77 {dimension_numbers = #tpu.dot_dimension_numbers<[1], [0], [0], [1], [0, 0, 1, 1], [], []>} : vector<16x32xbf16>, vector<32x96xbf16>, vector<16x96xf32> -> vector<16x96xf32>
    %c1_78 = arith.constant 1 : index
    %c0_79 = arith.constant 0 : index
    %c0_80 = arith.constant 0 : index
    %173 = vector.load %arg3[%c1_78, %c0_79, %c0_80] : memref<2x1x96xf32, #tpu.memory_space<vmem>>, vector<1x1x96xf32>
    %174 = vector.shape_cast %173 : vector<1x1x96xf32> to vector<1x96xf32>
    %175 = vector.broadcast %174 : vector<1x96xf32> to vector<16x96xf32>
    %176 = arith.addf %172, %175 : vector<16x96xf32>
    %177 = vector.extract_strided_slice %176 {offsets = [0, 0], sizes = [16, 8], strides = [1, 1]} : vector<16x96xf32> to vector<16x8xf32>
    %178 = vector.extract_strided_slice %176 {offsets = [0, 8], sizes = [16, 8], strides = [1, 1]} : vector<16x96xf32> to vector<16x8xf32>
    %179 = vector.extract_strided_slice %176 {offsets = [0, 16], sizes = [16, 8], strides = [1, 1]} : vector<16x96xf32> to vector<16x8xf32>
    %180 = vector.extract_strided_slice %176 {offsets = [0, 24], sizes = [16, 8], strides = [1, 1]} : vector<16x96xf32> to vector<16x8xf32>
    %181 = tpu.concatenate %177, %178, %179, %180 in 0 : vector<16x8xf32>, vector<16x8xf32>, vector<16x8xf32>, vector<16x8xf32> -> vector<64x8xf32>
    %182 = arith.truncf %181 : vector<64x8xf32> to vector<64x8xbf16>
    %183 = vector.extract_strided_slice %176 {offsets = [0, 32], sizes = [16, 8], strides = [1, 1]} : vector<16x96xf32> to vector<16x8xf32>
    %184 = vector.extract_strided_slice %176 {offsets = [0, 40], sizes = [16, 8], strides = [1, 1]} : vector<16x96xf32> to vector<16x8xf32>
    %185 = vector.extract_strided_slice %176 {offsets = [0, 48], sizes = [16, 8], strides = [1, 1]} : vector<16x96xf32> to vector<16x8xf32>
    %186 = vector.extract_strided_slice %176 {offsets = [0, 56], sizes = [16, 8], strides = [1, 1]} : vector<16x96xf32> to vector<16x8xf32>
    %187 = tpu.concatenate %183, %184, %185, %186 in 0 : vector<16x8xf32>, vector<16x8xf32>, vector<16x8xf32>, vector<16x8xf32> -> vector<64x8xf32>
    %188 = arith.truncf %187 : vector<64x8xf32> to vector<64x8xbf16>
    %189 = vector.extract_strided_slice %176 {offsets = [0, 64], sizes = [16, 8], strides = [1, 1]} : vector<16x96xf32> to vector<16x8xf32>
    %190 = vector.extract_strided_slice %176 {offsets = [0, 72], sizes = [16, 8], strides = [1, 1]} : vector<16x96xf32> to vector<16x8xf32>
    %191 = vector.extract_strided_slice %176 {offsets = [0, 80], sizes = [16, 8], strides = [1, 1]} : vector<16x96xf32> to vector<16x8xf32>
    %192 = vector.extract_strided_slice %176 {offsets = [0, 88], sizes = [16, 8], strides = [1, 1]} : vector<16x96xf32> to vector<16x8xf32>
    %193 = tpu.concatenate %189, %190, %191, %192 in 0 : vector<16x8xf32>, vector<16x8xf32>, vector<16x8xf32>, vector<16x8xf32> -> vector<64x8xf32>
    %194 = arith.truncf %193 : vector<64x8xf32> to vector<64x8xbf16>
    %cst_81 = arith.constant dense<0.000000e+00> : vector<64x64xf32>
    %195 = tpu.matmul %182, %188, %cst_81 {dimension_numbers = #tpu.dot_dimension_numbers<[1], [1], [0], [0], [0, 0, 1, 0], [], []>} : vector<64x8xbf16>, vector<64x8xbf16>, vector<64x64xf32> -> vector<64x64xf32>
    %196 = arith.addf %195, %1 : vector<64x64xf32>
    %cst_82 = arith.constant dense<0xFF800000> : vector<64xf32>
    %197 = vector.multi_reduction <maximumf>, %196, %cst_82 [1] : vector<64x64xf32> to vector<64xf32>
    %198 = vector.shape_cast %197 : vector<64xf32> to vector<64x1xf32>
    %199 = vector.broadcast %198 : vector<64x1xf32> to vector<64x64xf32>
    %200 = arith.subf %196, %199 : vector<64x64xf32>
    %201 = math.exp %200 : vector<64x64xf32>
    %cst_83 = arith.constant dense<0.000000e+00> : vector<64xf32>
    %202 = vector.multi_reduction <add>, %201, %cst_83 [1] : vector<64x64xf32> to vector<64xf32>
    %203 = vector.shape_cast %202 : vector<64xf32> to vector<64x1xf32>
    %204 = arith.truncf %201 : vector<64x64xf32> to vector<64x64xbf16>
    %cst_84 = arith.constant dense<0.000000e+00> : vector<64x8xf32>
    %205 = tpu.matmul %204, %194, %cst_84 {dimension_numbers = #tpu.dot_dimension_numbers<[1], [0], [0], [1], [0, 0, 1, 1], [], []>} : vector<64x64xbf16>, vector<64x8xbf16>, vector<64x8xf32> -> vector<64x8xf32>
    %206 = tpu.reciprocal %203 {approx = true} : vector<64x1xf32> -> vector<64x1xf32>
    %207 = vector.broadcast %206 : vector<64x1xf32> to vector<64x8xf32>
    %208 = arith.mulf %205, %207 : vector<64x8xf32>
    %209 = vector.extract_strided_slice %208 {offsets = [0, 0], sizes = [16, 8], strides = [1, 1]} : vector<64x8xf32> to vector<16x8xf32>
    %210 = vector.extract_strided_slice %208 {offsets = [16, 0], sizes = [16, 8], strides = [1, 1]} : vector<64x8xf32> to vector<16x8xf32>
    %211 = vector.extract_strided_slice %208 {offsets = [32, 0], sizes = [16, 8], strides = [1, 1]} : vector<64x8xf32> to vector<16x8xf32>
    %212 = vector.extract_strided_slice %208 {offsets = [48, 0], sizes = [16, 8], strides = [1, 1]} : vector<64x8xf32> to vector<16x8xf32>
    %213 = tpu.concatenate %209, %210, %211, %212 in 1 : vector<16x8xf32>, vector<16x8xf32>, vector<16x8xf32>, vector<16x8xf32> -> vector<16x32xf32>
    %214 = arith.truncf %213 : vector<16x32xf32> to vector<16x32xbf16>
    %c1_85 = arith.constant 1 : index
    %c0_86 = arith.constant 0 : index
    %c0_87 = arith.constant 0 : index
    %215 = vector.load %arg4[%c1_85, %c0_86, %c0_87] : memref<2x32x32xbf16, #tpu.memory_space<vmem>>, vector<1x32x32xbf16>
    %216 = vector.shape_cast %215 : vector<1x32x32xbf16> to vector<32x32xbf16>
    %cst_88 = arith.constant dense<0.000000e+00> : vector<16x32xf32>
    %217 = tpu.matmul %214, %216, %cst_88 {dimension_numbers = #tpu.dot_dimension_numbers<[1], [0], [0], [1], [0, 0, 1, 1], [], []>} : vector<16x32xbf16>, vector<32x32xbf16>, vector<16x32xf32> -> vector<16x32xf32>
    %c1_89 = arith.constant 1 : index
    %c0_90 = arith.constant 0 : index
    %c0_91 = arith.constant 0 : index
    %218 = vector.load %arg5[%c1_89, %c0_90, %c0_91] : memref<2x1x32xf32, #tpu.memory_space<vmem>>, vector<1x1x32xf32>
    %219 = vector.shape_cast %218 : vector<1x1x32xf32> to vector<1x32xf32>
    %220 = vector.broadcast %219 : vector<1x32xf32> to vector<16x32xf32>
    %221 = arith.addf %217, %220 : vector<16x32xf32>
    %222 = arith.addf %221, %165 : vector<16x32xf32>
    %c1_92 = arith.constant 1 : index
    %c0_93 = arith.constant 0 : index
    %c0_94 = arith.constant 0 : index
    %223 = vector.load %arg6[%c1_92, %c0_93, %c0_94] : memref<2x1x32xf32, #tpu.memory_space<vmem>>, vector<1x1x32xf32>
    %224 = vector.shape_cast %223 : vector<1x1x32xf32> to vector<1x32xf32>
    %c1_95 = arith.constant 1 : index
    %c0_96 = arith.constant 0 : index
    %c0_97 = arith.constant 0 : index
    %225 = vector.load %arg7[%c1_95, %c0_96, %c0_97] : memref<2x1x32xf32, #tpu.memory_space<vmem>>, vector<1x1x32xf32>
    %226 = vector.shape_cast %225 : vector<1x1x32xf32> to vector<1x32xf32>
    %cst_98 = arith.constant dense<0.000000e+00> : vector<16xf32>
    %227 = vector.multi_reduction <add>, %222, %cst_98 [1] : vector<16x32xf32> to vector<16xf32>
    %228 = vector.shape_cast %227 : vector<16xf32> to vector<16x1xf32>
    %cst_99 = arith.constant 3.200000e+01 : f32
    %229 = vector.broadcast %cst_99 : f32 to vector<16x1xf32>
    %230 = arith.divf %228, %229 : vector<16x1xf32>
    %231 = vector.broadcast %230 : vector<16x1xf32> to vector<16x32xf32>
    %232 = arith.subf %222, %231 : vector<16x32xf32>
    %233 = arith.mulf %232, %232 : vector<16x32xf32>
    %cst_100 = arith.constant dense<0.000000e+00> : vector<16xf32>
    %234 = vector.multi_reduction <add>, %233, %cst_100 [1] : vector<16x32xf32> to vector<16xf32>
    %235 = vector.shape_cast %234 : vector<16xf32> to vector<16x1xf32>
    %cst_101 = arith.constant 3.200000e+01 : f32
    %236 = vector.broadcast %cst_101 : f32 to vector<16x1xf32>
    %237 = arith.divf %235, %236 : vector<16x1xf32>
    %238 = vector.broadcast %230 : vector<16x1xf32> to vector<16x32xf32>
    %239 = arith.subf %222, %238 : vector<16x32xf32>
    %cst_102 = arith.constant 9.99999974E-6 : f32
    %240 = vector.broadcast %cst_102 : f32 to vector<16x1xf32>
    %241 = arith.addf %237, %240 : vector<16x1xf32>
    %242 = math.rsqrt %241 : vector<16x1xf32>
    %243 = vector.broadcast %242 : vector<16x1xf32> to vector<16x32xf32>
    %244 = arith.mulf %239, %243 : vector<16x32xf32>
    %245 = vector.broadcast %224 : vector<1x32xf32> to vector<16x32xf32>
    %246 = arith.mulf %245, %244 : vector<16x32xf32>
    %247 = vector.broadcast %226 : vector<1x32xf32> to vector<16x32xf32>
    %248 = arith.addf %246, %247 : vector<16x32xf32>
    %249 = arith.truncf %248 : vector<16x32xf32> to vector<16x32xbf16>
    %c1_103 = arith.constant 1 : index
    %c0_104 = arith.constant 0 : index
    %c0_105 = arith.constant 0 : index
    %250 = vector.load %arg8[%c1_103, %c0_104, %c0_105] : memref<2x32x64xbf16, #tpu.memory_space<vmem>>, vector<1x32x64xbf16>
    %251 = vector.shape_cast %250 : vector<1x32x64xbf16> to vector<32x64xbf16>
    %cst_106 = arith.constant dense<0.000000e+00> : vector<16x64xf32>
    %252 = tpu.matmul %249, %251, %cst_106 {dimension_numbers = #tpu.dot_dimension_numbers<[1], [0], [0], [1], [0, 0, 1, 1], [], []>} : vector<16x32xbf16>, vector<32x64xbf16>, vector<16x64xf32> -> vector<16x64xf32>
    %c1_107 = arith.constant 1 : index
    %c0_108 = arith.constant 0 : index
    %c0_109 = arith.constant 0 : index
    %253 = vector.load %arg9[%c1_107, %c0_108, %c0_109] : memref<2x1x64xf32, #tpu.memory_space<vmem>>, vector<1x1x64xf32>
    %254 = vector.shape_cast %253 : vector<1x1x64xf32> to vector<1x64xf32>
    %255 = vector.broadcast %254 : vector<1x64xf32> to vector<16x64xf32>
    %256 = arith.addf %252, %255 : vector<16x64xf32>
    %cst_110 = arith.constant 5.000000e-01 : f32
    %257 = vector.broadcast %cst_110 : f32 to vector<16x64xf32>
    %258 = arith.mulf %256, %257 : vector<16x64xf32>
    %cst_111 = arith.constant 0.707106769 : f32
    %259 = vector.broadcast %cst_111 : f32 to vector<16x64xf32>
    %260 = arith.mulf %256, %259 : vector<16x64xf32>
    %cst_112 = arith.constant 0.000000e+00 : f32
    %261 = vector.broadcast %cst_112 : f32 to vector<16x64xf32>
    %262 = arith.cmpf olt, %260, %261 : vector<16x64xf32>
    %cst_113 = arith.constant -1.000000e+00 : f32
    %cst_114 = arith.constant 1.000000e+00 : f32
    %263 = vector.broadcast %cst_113 : f32 to vector<16x64xf32>
    %264 = vector.broadcast %cst_114 : f32 to vector<16x64xf32>
    %265 = arith.select %262, %263, %264 : vector<16x64xi1>, vector<16x64xf32>
    %266 = math.absf %260 : vector<16x64xf32>
    %cst_115 = arith.constant 0.327591091 : f32
    %267 = vector.broadcast %cst_115 : f32 to vector<16x64xf32>
    %268 = arith.mulf %267, %266 : vector<16x64xf32>
    %cst_116 = arith.constant 1.000000e+00 : f32
    %269 = vector.broadcast %cst_116 : f32 to vector<16x64xf32>
    %270 = arith.addf %269, %268 : vector<16x64xf32>
    %cst_117 = arith.constant 1.000000e+00 : f32
    %271 = vector.broadcast %cst_117 : f32 to vector<16x64xf32>
    %272 = arith.divf %271, %270 : vector<16x64xf32>
    %cst_118 = arith.constant 1.06140542 : f32
    %273 = vector.broadcast %cst_118 : f32 to vector<16x64xf32>
    %274 = arith.mulf %273, %272 : vector<16x64xf32>
    %cst_119 = arith.constant 1.45315206 : f32
    %275 = vector.broadcast %cst_119 : f32 to vector<16x64xf32>
    %276 = arith.subf %274, %275 : vector<16x64xf32>
    %277 = arith.mulf %276, %272 : vector<16x64xf32>
    %cst_120 = arith.constant 1.42141378 : f32
    %278 = vector.broadcast %cst_120 : f32 to vector<16x64xf32>
    %279 = arith.addf %277, %278 : vector<16x64xf32>
    %280 = arith.mulf %279, %272 : vector<16x64xf32>
    %cst_121 = arith.constant 0.284496725 : f32
    %281 = vector.broadcast %cst_121 : f32 to vector<16x64xf32>
    %282 = arith.subf %280, %281 : vector<16x64xf32>
    %283 = arith.mulf %282, %272 : vector<16x64xf32>
    %cst_122 = arith.constant 0.254829586 : f32
    %284 = vector.broadcast %cst_122 : f32 to vector<16x64xf32>
    %285 = arith.addf %283, %284 : vector<16x64xf32>
    %286 = arith.mulf %285, %272 : vector<16x64xf32>
    %cst_123 = arith.constant 0.000000e+00 : f32
    %287 = vector.broadcast %cst_123 : f32 to vector<16x64xf32>
    %288 = arith.subf %287, %266 : vector<16x64xf32>
    %289 = arith.mulf %288, %266 : vector<16x64xf32>
    %290 = math.exp %289 : vector<16x64xf32>
    %291 = arith.mulf %286, %290 : vector<16x64xf32>
    %cst_124 = arith.constant 1.000000e+00 : f32
    %292 = vector.broadcast %cst_124 : f32 to vector<16x64xf32>
    %293 = arith.subf %292, %291 : vector<16x64xf32>
    %294 = arith.mulf %265, %293 : vector<16x64xf32>
    %cst_125 = arith.constant 1.000000e+00 : f32
    %295 = vector.broadcast %cst_125 : f32 to vector<16x64xf32>
    %296 = arith.addf %295, %294 : vector<16x64xf32>
    %297 = arith.mulf %258, %296 : vector<16x64xf32>
    %298 = arith.truncf %297 : vector<16x64xf32> to vector<16x64xbf16>
    %c1_126 = arith.constant 1 : index
    %c0_127 = arith.constant 0 : index
    %c0_128 = arith.constant 0 : index
    %299 = vector.load %arg10[%c1_126, %c0_127, %c0_128] : memref<2x64x32xbf16, #tpu.memory_space<vmem>>, vector<1x64x32xbf16>
    %300 = vector.shape_cast %299 : vector<1x64x32xbf16> to vector<64x32xbf16>
    %cst_129 = arith.constant dense<0.000000e+00> : vector<16x32xf32>
    %301 = tpu.matmul %298, %300, %cst_129 {dimension_numbers = #tpu.dot_dimension_numbers<[1], [0], [0], [1], [0, 0, 1, 1], [], []>} : vector<16x64xbf16>, vector<64x32xbf16>, vector<16x32xf32> -> vector<16x32xf32>
    %c1_130 = arith.constant 1 : index
    %c0_131 = arith.constant 0 : index
    %c0_132 = arith.constant 0 : index
    %302 = vector.load %arg11[%c1_130, %c0_131, %c0_132] : memref<2x1x32xf32, #tpu.memory_space<vmem>>, vector<1x1x32xf32>
    %303 = vector.shape_cast %302 : vector<1x1x32xf32> to vector<1x32xf32>
    %304 = vector.broadcast %303 : vector<1x32xf32> to vector<16x32xf32>
    %305 = arith.addf %301, %304 : vector<16x32xf32>
    %306 = arith.addf %305, %248 : vector<16x32xf32>
    %c1_133 = arith.constant 1 : index
    %c0_134 = arith.constant 0 : index
    %c0_135 = arith.constant 0 : index
    %307 = vector.load %arg12[%c1_133, %c0_134, %c0_135] : memref<2x1x32xf32, #tpu.memory_space<vmem>>, vector<1x1x32xf32>
    %308 = vector.shape_cast %307 : vector<1x1x32xf32> to vector<1x32xf32>
    %c1_136 = arith.constant 1 : index
    %c0_137 = arith.constant 0 : index
    %c0_138 = arith.constant 0 : index
    %309 = vector.load %arg13[%c1_136, %c0_137, %c0_138] : memref<2x1x32xf32, #tpu.memory_space<vmem>>, vector<1x1x32xf32>
    %310 = vector.shape_cast %309 : vector<1x1x32xf32> to vector<1x32xf32>
    %cst_139 = arith.constant dense<0.000000e+00> : vector<16xf32>
    %311 = vector.multi_reduction <add>, %306, %cst_139 [1] : vector<16x32xf32> to vector<16xf32>
    %312 = vector.shape_cast %311 : vector<16xf32> to vector<16x1xf32>
    %cst_140 = arith.constant 3.200000e+01 : f32
    %313 = vector.broadcast %cst_140 : f32 to vector<16x1xf32>
    %314 = arith.divf %312, %313 : vector<16x1xf32>
    %315 = vector.broadcast %314 : vector<16x1xf32> to vector<16x32xf32>
    %316 = arith.subf %306, %315 : vector<16x32xf32>
    %317 = arith.mulf %316, %316 : vector<16x32xf32>
    %cst_141 = arith.constant dense<0.000000e+00> : vector<16xf32>
    %318 = vector.multi_reduction <add>, %317, %cst_141 [1] : vector<16x32xf32> to vector<16xf32>
    %319 = vector.shape_cast %318 : vector<16xf32> to vector<16x1xf32>
    %cst_142 = arith.constant 3.200000e+01 : f32
    %320 = vector.broadcast %cst_142 : f32 to vector<16x1xf32>
    %321 = arith.divf %319, %320 : vector<16x1xf32>
    %322 = vector.broadcast %314 : vector<16x1xf32> to vector<16x32xf32>
    %323 = arith.subf %306, %322 : vector<16x32xf32>
    %cst_143 = arith.constant 9.99999974E-6 : f32
    %324 = vector.broadcast %cst_143 : f32 to vector<16x1xf32>
    %325 = arith.addf %321, %324 : vector<16x1xf32>
    %326 = math.rsqrt %325 : vector<16x1xf32>
    %327 = vector.broadcast %326 : vector<16x1xf32> to vector<16x32xf32>
    %328 = arith.mulf %323, %327 : vector<16x32xf32>
    %329 = vector.broadcast %308 : vector<1x32xf32> to vector<16x32xf32>
    %330 = arith.mulf %329, %328 : vector<16x32xf32>
    %331 = vector.broadcast %310 : vector<1x32xf32> to vector<16x32xf32>
    %332 = arith.addf %330, %331 : vector<16x32xf32>
    %c1_144 = arith.constant 1 : index
    %c0_145 = arith.constant 0 : index
    %c0_146 = arith.constant 0 : index
    %333 = vector.load %arg14[%c1_144, %c0_145, %c0_146] : memref<2x16x32xf32, #tpu.memory_space<vmem>>, vector<1x16x32xf32>
    %334 = vector.shape_cast %333 : vector<1x16x32xf32> to vector<16x32xf32>
    %335 = vector.shape_cast %332 : vector<16x32xf32> to vector<1x16x32xf32>
    tpu.vector_store %arg14[%c1_144, %c0_145, %c0_146], %335 {strides = array<i32>} : memref<2x16x32xf32, #tpu.memory_space<vmem>>, vector<1x16x32xf32>,
    return
  }
}

</mosaic_0001>

<llo_original>
// kernel: tile.8
$region0: #{tile.8}
  #allocation0 [shape = 's32[1]{0}', space=sflag, size = 0x4, scoped, tag = 'scoped memory for tile.8']
  %s0 = inlined_call_operand.vmem [shape: f32[16,16], index: 0, kind: input, shape index: {}]
  %s1 = inlined_call_operand.vmem [shape: f32[4,16,4,16], index: 1, kind: output, shape index: {}]
  // Predicated region
  $region2: #{tile.8} parent=0 // pred_check
    _
  $region3: #{tile.8} parent=0 // pred_check_branch
    %3 = sbr.rel (0) target = $region5
  $region4: #{tile.8} parent=0 // pred_region
    _
  $region5: #{tile.8} parent=0 // pred_fallthru
    _
  %v4 = vld [vmem:[%s0] ss:$0 sm:$0xff]
  %5 = vst [vmem:[%s1] sm:$0xf] %v4
  %s6 = scalar_lea.vmem %s1, 64
  %7 = vst [vmem:[%s6] sm:$0xf] %v4
  %s8 = scalar_lea.vmem %s1, 128
  %9 = vst [vmem:[%s8] sm:$0xf] %v4
  %s10 = scalar_lea.vmem %s1, 192
  %11 = vst [vmem:[%s10] sm:$0xf] %v4
  %s12 = scalar_lea.vmem %s0, 1
  %v13 = vld [vmem:[%s12] ss:$0 sm:$0xff]
  %s14 = scalar_lea.vmem %s1, 4
  %15 = vst [vmem:[%s14] sm:$0xf] %v13
  %s16 = scalar_lea.vmem %s1, 68
  %17 = vst [vmem:[%s16] sm:$0xf] %v13
  %s18 = scalar_lea.vmem %s1, 132
  %19 = vst [vmem:[%s18] sm:$0xf] %v13
  %s20 = scalar_lea.vmem %s1, 196
  %21 = vst [vmem:[%s20] sm:$0xf] %v13
  %s22 = scalar_lea.vmem %s0, 2
  %v23 = vld [vmem:[%s22] ss:$0 sm:$0xff]
  %s24 = scalar_lea.vmem %s1, 8
  %25 = vst [vmem:[%s24] sm:$0xf] %v23
  %s26 = scalar_lea.vmem %s1, 72
  %27 = vst [vmem:[%s26] sm:$0xf] %v23
  %s28 = scalar_lea.vmem %s1, 136
  %29 = vst [vmem:[%s28] sm:$0xf] %v23
  %s30 = scalar_lea.vmem %s1, 200
  %31 = vst [vmem:[%s30] sm:$0xf] %v23
  %s32 = scalar_lea.vmem %s0, 3
  %v33 = vld [vmem:[%s32] ss:$0 sm:$0xff]
  %s34 = scalar_lea.vmem %s1, 12
  %35 = vst [vmem:[%s34] sm:$0xf] %v33
  %s36 = scalar_lea.vmem %s1, 76
  %37 = vst [vmem:[%s36] sm:$0xf] %v33
  %s38 = scalar_lea.vmem %s1, 140
  %39 = vst [vmem:[%s38] sm:$0xf] %v33
  %s40 = scalar_lea.vmem %s1, 204
  %41 = vst [vmem:[%s40] sm:$0xf] %v33
  %s42 = scalar_lea.vmem %s0, 4
  %v43 = vld [vmem:[%s42] ss:$0 sm:$0xff]
  %s44 = scalar_lea.vmem %s1, 16
  %45 = vst [vmem:[%s44] sm:$0xf] %v43
  %s46 = scalar_lea.vmem %s1, 80
  %47 = vst [vmem:[%s46] sm:$0xf] %v43
  %s48 = scalar_lea.vmem %s1, 144
  %49 = vst [vmem:[%s48] sm:$0xf] %v43
  %s50 = scalar_lea.vmem %s1, 208
  %51 = vst [vmem:[%s50] sm:$0xf] %v43
  %s52 = scalar_lea.vmem %s0, 5
  %v53 = vld [vmem:[%s52] ss:$0 sm:$0xff]
  %s54 = scalar_lea.vmem %s1, 20
  %55 = vst [vmem:[%s54] sm:$0xf] %v53
  %s56 = scalar_lea.vmem %s1, 84
  %57 = vst [vmem:[%s56] sm:$0xf] %v53
  %s58 = scalar_lea.vmem %s1, 148
  %59 = vst [vmem:[%s58] sm:$0xf] %v53
  %s60 = scalar_lea.vmem %s1, 212
  %61 = vst [vmem:[%s60] sm:$0xf] %v53
  %s62 = scalar_lea.vmem %s0, 6
  %v63 = vld [vmem:[%s62] ss:$0 sm:$0xff]
  %s64 = scalar_lea.vmem %s1, 24
  %65 = vst [vmem:[%s64] sm:$0xf] %v63
  %s66 = scalar_lea.vmem %s1, 88
  %67 = vst [vmem:[%s66] sm:$0xf] %v63
  %s68 = scalar_lea.vmem %s1, 152
  %69 = vst [vmem:[%s68] sm:$0xf] %v63
  %s70 = scalar_lea.vmem %s1, 216
  %71 = vst [vmem:[%s70] sm:$0xf] %v63
  %s72 = scalar_lea.vmem %s0, 7
  %v73 = vld [vmem:[%s72] ss:$0 sm:$0xff]
  %s74 = scalar_lea.vmem %s1, 28
  %75 = vst [vmem:[%s74] sm:$0xf] %v73
  %s76 = scalar_lea.vmem %s1, 92
  %77 = vst [vmem:[%s76] sm:$0xf] %v73
  %s78 = scalar_lea.vmem %s1, 156
  %79 = vst [vmem:[%s78] sm:$0xf] %v73
  %s80 = scalar_lea.vmem %s1, 220
  %81 = vst [vmem:[%s80] sm:$0xf] %v73
  %s82 = scalar_lea.vmem %s0, 8
  %v83 = vld [vmem:[%s82] ss:$0 sm:$0xff]
  %s84 = scalar_lea.vmem %s1, 32
  %85 = vst [vmem:[%s84] sm:$0xf] %v83
  %s86 = scalar_lea.vmem %s1, 96
  %87 = vst [vmem:[%s86] sm:$0xf] %v83
  %s88 = scalar_lea.vmem %s1, 160
  %89 = vst [vmem:[%s88] sm:$0xf] %v83
  %s90 = scalar_lea.vmem %s1, 224
  %91 = vst [vmem:[%s90] sm:$0xf] %v83
  %s92 = scalar_lea.vmem %s0, 8
  %s93 = scalar_lea.vmem %s92, 1
  %v94 = vld [vmem:[%s93] ss:$0 sm:$0xff]
  %s95 = scalar_lea.vmem %s1, 36
  %96 = vst [vmem:[%s95] sm:$0xf] %v94
  %s97 = scalar_lea.vmem %s1, 100
  %98 = vst [vmem:[%s97] sm:$0xf] %v94
  %s99 = scalar_lea.vmem %s1, 164
  %100 = vst [vmem:[%s99] sm:$0xf] %v94
  %s101 = scalar_lea.vmem %s1, 228
  %102 = vst [vmem:[%s101] sm:$0xf] %v94
  %s103 = scalar_lea.vmem %s0, 8
  %s104 = scalar_lea.vmem %s103, 2
  %v105 = vld [vmem:[%s104] ss:$0 sm:$0xff]
  %s106 = scalar_lea.vmem %s1, 40
  %107 = vst [vmem:[%s106] sm:$0xf] %v105
  %s108 = scalar_lea.vmem %s1, 104
  %109 = vst [vmem:[%s108] sm:$0xf] %v105
  %s110 = scalar_lea.vmem %s1, 168
  %111 = vst [vmem:[%s110] sm:$0xf] %v105
  %s112 = scalar_lea.vmem %s1, 232
  %113 = vst [vmem:[%s112] sm:$0xf] %v105
  %s114 = scalar_lea.vmem %s0, 8
  %s115 = scalar_lea.vmem %s114, 3
  %v116 = vld [vmem:[%s115] ss:$0 sm:$0xff]
  %s117 = scalar_lea.vmem %s1, 44
  %118 = vst [vmem:[%s117] sm:$0xf] %v116
  %s119 = scalar_lea.vmem %s1, 108
  %120 = vst [vmem:[%s119] sm:$0xf] %v116
  %s121 = scalar_lea.vmem %s1, 172
  %122 = vst [vmem:[%s121] sm:$0xf] %v116
  %s123 = scalar_lea.vmem %s1, 236
  %124 = vst [vmem:[%s123] sm:$0xf] %v116
  %s125 = scalar_lea.vmem %s0, 8
  %s126 = scalar_lea.vmem %s125, 4
  %v127 = vld [vmem:[%s126] ss:$0 sm:$0xff]
  %s128 = scalar_lea.vmem %s1, 48
  %129 = vst [vmem:[%s128] sm:$0xf] %v127
  %s130 = scalar_lea.vmem %s1, 112
  %131 = vst [vmem:[%s130] sm:$0xf] %v127
  %s132 = scalar_lea.vmem %s1, 176
  %133 = vst [vmem:[%s132] sm:$0xf] %v127
  %s134 = scalar_lea.vmem %s1, 240
  %135 = vst [vmem:[%s134] sm:$0xf] %v127
  %s136 = scalar_lea.vmem %s0, 8
  %s137 = scalar_lea.vmem %s136, 5
  %v138 = vld [vmem:[%s137] ss:$0 sm:$0xff]
  %s139 = scalar_lea.vmem %s1, 52
  %140 = vst [vmem:[%s139] sm:$0xf] %v138
  %s141 = scalar_lea.vmem %s1, 116
  %142 = vst [vmem:[%s141] sm:$0xf] %v138
  %s143 = scalar_lea.vmem %s1, 180
  %144 = vst [vmem:[%s143] sm:$0xf] %v138
  %s145 = scalar_lea.vmem %s1, 244
  %146 = vst [vmem:[%s145] sm:$0xf] %v138
  %s147 = scalar_lea.vmem %s0, 8
  %s148 = scalar_lea.vmem %s147, 6
  %v149 = vld [vmem:[%s148] ss:$0 sm:$0xff]
  %s150 = scalar_lea.vmem %s1, 56
  %151 = vst [vmem:[%s150] sm:$0xf] %v149
  %s152 = scalar_lea.vmem %s1, 120
  %153 = vst [vmem:[%s152] sm:$0xf] %v149
  %s154 = scalar_lea.vmem %s1, 184
  %155 = vst [vmem:[%s154] sm:$0xf] %v149
  %s156 = scalar_lea.vmem %s1, 248
  %157 = vst [vmem:[%s156] sm:$0xf] %v149
  %s158 = scalar_lea.vmem %s0, 8
  %s159 = scalar_lea.vmem %s158, 7
  %v160 = vld [vmem:[%s159] ss:$0 sm:$0xff]
  %s161 = scalar_lea.vmem %s1, 60
  %162 = vst [vmem:[%s161] sm:$0xf] %v160
  %s163 = scalar_lea.vmem %s1, 124
  %164 = vst [vmem:[%s163] sm:$0xf] %v160
  %s165 = scalar_lea.vmem %s1, 188
  %166 = vst [vmem:[%s165] sm:$0xf] %v160
  %s167 = scalar_lea.vmem %s1, 252
  %168 = vst [vmem:[%s167] sm:$0xf] %v160

// kernel: tile.9
$region0: #{tile.9}
  %s0 = inlined_call_operand.vmem [shape: f32[4,16,4,16], index: 0, kind: input, shape index: {}]
  %s1 = inlined_call_operand.vmem [shape: f32[64,64], index: 1, kind: output, shape index: {}]
  $region1: #{tile.9} parent=0
    #allocation0 [shape = 'u8[262144]{0}', space=vmem, size = 0x40000, scoped, tag = 'scoped mem for input reshape']
    %s3 = sshllo.u32 0, 4
    %s4 = smul.addr 4, 63
    %s5 = scalar_lea.vmem %s0, %s4
    %v6 = vld [vmem:[%s5] sm:%s3]
    %s7 = scalar_lea.vmem [#allocation0], 504
    %8 = vst [vmem:[%s7] sm:%s3] %v6
    %s9 = smul.addr 4, 62
    %s10 = scalar_lea.vmem %s0, %s9
    %v11 = vld [vmem:[%s10] sm:%s3]
    %s12 = scalar_lea.vmem [#allocation0], 496
    %13 = vst [vmem:[%s12] sm:%s3] %v11
    %s14 = smul.addr 4, 61
    %s15 = scalar_lea.vmem %s0, %s14
    %v16 = vld [vmem:[%s15] sm:%s3]
    %s17 = scalar_lea.vmem [#allocation0], 488
    %18 = vst [vmem:[%s17] sm:%s3] %v16
    %s19 = smul.addr 4, 60
    %s20 = scalar_lea.vmem %s0, %s19
    %v21 = vld [vmem:[%s20] sm:%s3]
    %s22 = scalar_lea.vmem [#allocation0], 480
    %23 = vst [vmem:[%s22] sm:%s3] %v21
    %s24 = smul.addr 4, 59
    %s25 = scalar_lea.vmem %s0, %s24
    %v26 = vld [vmem:[%s25] sm:%s3]
    %s27 = scalar_lea.vmem [#allocation0], 472
    %28 = vst [vmem:[%s27] sm:%s3] %v26
    %s29 = smul.addr 4, 58
    %s30 = scalar_lea.vmem %s0, %s29
    %v31 = vld [vmem:[%s30] sm:%s3]
    %s32 = scalar_lea.vmem [#allocation0], 464
    %33 = vst [vmem:[%s32] sm:%s3] %v31
    %s34 = smul.addr 4, 57
    %s35 = scalar_lea.vmem %s0, %s34
    %v36 = vld [vmem:[%s35] sm:%s3]
    %s37 = scalar_lea.vmem [#allocation0], 456
    %38 = vst [vmem:[%s37] sm:%s3] %v36
    %s39 = smul.addr 4, 56
    %s40 = scalar_lea.vmem %s0, %s39
    %v41 = vld [vmem:[%s40] sm:%s3]
    %s42 = scalar_lea.vmem [#allocation0], 448
    %43 = vst [vmem:[%s42] sm:%s3] %v41
    %s44 = smul.addr 4, 55
    %s45 = scalar_lea.vmem %s0, %s44
    %v46 = vld [vmem:[%s45] sm:%s3]
    %s47 = scalar_lea.vmem [#allocation0], 440
    %48 = vst [vmem:[%s47] sm:%s3] %v46
    %s49 = smul.addr 4, 54
    %s50 = scalar_lea.vmem %s0, %s49
    %v51 = vld [vmem:[%s50] sm:%s3]
    %s52 = scalar_lea.vmem [#allocation0], 432
    %53 = vst [vmem:[%s52] sm:%s3] %v51
    %s54 = smul.addr 4, 53
    %s55 = scalar_lea.vmem %s0, %s54
    %v56 = vld [vmem:[%s55] sm:%s3]
    %s57 = scalar_lea.vmem [#allocation0], 424
    %58 = vst [vmem:[%s57] sm:%s3] %v56
    %s59 = smul.addr 4, 52
    %s60 = scalar_lea.vmem %s0, %s59
    %v61 = vld [vmem:[%s60] sm:%s3]
    %s62 = scalar_lea.vmem [#allocation0], 416
    %63 = vst [vmem:[%s62] sm:%s3] %v61
    %s64 = smul.addr 4, 51
    %s65 = scalar_lea.vmem %s0, %s64
    %v66 = vld [vmem:[%s65] sm:%s3]
    %s67 = scalar_lea.vmem [#allocation0], 408
    %68 = vst [vmem:[%s67] sm:%s3] %v66
    %s69 = smul.addr 4, 50
    %s70 = scalar_lea.vmem %s0, %s69
    %v71 = vld [vmem:[%s70] sm:%s3]
    %s72 = scalar_lea.vmem [#allocation0], 400
    %73 = vst [vmem:[%s72] sm:%s3] %v71
    %s74 = smul.addr 4, 49
    %s75 = scalar_lea.vmem %s0, %s74
    %v76 = vld [vmem:[%s75] sm:%s3]
    %s77 = scalar_lea.vmem [#allocation0], 392
    %78 = vst [vmem:[%s77] sm:%s3] %v76
    %s79 = smul.addr 4, 48
    %s80 = scalar_lea.vmem %s0, %s79
    %v81 = vld [vmem:[%s80] sm:%s3]
    %s82 = scalar_lea.vmem [#allocation0], 384
    %83 = vst [vmem:[%s82] sm:%s3] %v81
    %s84 = smul.addr 4, 47
    %s85 = scalar_lea.vmem %s0, %s84
    %v86 = vld [vmem:[%s85] sm:%s3]
    %s87 = scalar_lea.vmem [#allocation0], 376
    %88 = vst [vmem:[%s87] sm:%s3] %v86
    %s89 = smul.addr 4, 46
    %s90 = scalar_lea.vmem %s0, %s89
    %v91 = vld [vmem:[%s90] sm:%s3]
    %s92 = scalar_lea.vmem [#allocation0], 368
    %93 = vst [vmem:[%s92] sm:%s3] %v91
    %s94 = smul.addr 4, 45
    %s95 = scalar_lea.vmem %s0, %s94
    %v96 = vld [vmem:[%s95] sm:%s3]
    %s97 = scalar_lea.vmem [#allocation0], 360
    %98 = vst [vmem:[%s97] sm:%s3] %v96
    %s99 = smul.addr 4, 44
    %s100 = scalar_lea.vmem %s0, %s99
    %v101 = vld [vmem:[%s100] sm:%s3]
    %s102 = scalar_lea.vmem [#allocation0], 352
    %103 = vst [vmem:[%s102] sm:%s3] %v101
    %s104 = smul.addr 4, 43
    %s105 = scalar_lea.vmem %s0, %s104
    %v106 = vld [vmem:[%s105] sm:%s3]
    %s107 = scalar_lea.vmem [#allocation0], 344
    %108 = vst [vmem:[%s107] sm:%s3] %v106
    %s109 = smul.addr 4, 42
    %s110 = scalar_lea.vmem %s0, %s109
    %v111 = vld [vmem:[%s110] sm:%s3]
    %s112 = scalar_lea.vmem [#allocation0], 336
    %113 = vst [vmem:[%s112] sm:%s3] %v111
    %s114 = smul.addr 4, 41
    %s115 = scalar_lea.vmem %s0, %s114
    %v116 = vld [vmem:[%s115] sm:%s3]
    %s117 = scalar_lea.vmem [#allocation0], 328
    %118 = vst [vmem:[%s117] sm:%s3] %v116
    %s119 = smul.addr 4, 40
    %s120 = scalar_lea.vmem %s0, %s119
    %v121 = vld [vmem:[%s120] sm:%s3]
    %s122 = scalar_lea.vmem [#allocation0], 320
    %123 = vst [vmem:[%s122] sm:%s3] %v121
    %s124 = smul.addr 4, 39
    %s125 = scalar_lea.vmem %s0, %s124
    %v126 = vld [vmem:[%s125] sm:%s3]
    %s127 = scalar_lea.vmem [#allocation0], 312
    %128 = vst [vmem:[%s127] sm:%s3] %v126
    %s129 = smul.addr 4, 38
    %s130 = scalar_lea.vmem %s0, %s129
    %v131 = vld [vmem:[%s130] sm:%s3]
    %s132 = scalar_lea.vmem [#allocation0], 304
    %133 = vst [vmem:[%s132] sm:%s3] %v131
    %s134 = smul.addr 4, 37
    %s135 = scalar_lea.vmem %s0, %s134
    %v136 = vld [vmem:[%s135] sm:%s3]
    %s137 = scalar_lea.vmem [#allocation0], 296
    %138 = vst [vmem:[%s137] sm:%s3] %v136
    %s139 = smul.addr 4, 36
    %s140 = scalar_lea.vmem %s0, %s139
    %v141 = vld [vmem:[%s140] sm:%s3]
    %s142 = scalar_lea.vmem [#allocation0], 288
    %143 = vst [vmem:[%s142] sm:%s3] %v141
    %s144 = smul.addr 4, 35
    %s145 = scalar_lea.vmem %s0, %s144
    %v146 = vld [vmem:[%s145] sm:%s3]
    %s147 = scalar_lea.vmem [#allocation0], 280
    %148 = vst [vmem:[%s147] sm:%s3] %v146
    %s149 = smul.addr 4, 34
    %s150 = scalar_lea.vmem %s0, %s149
    %v151 = vld [vmem:[%s150] sm:%s3]
    %s152 = scalar_lea.vmem [#allocation0], 272
    %153 = vst [vmem:[%s152] sm:%s3] %v151
    %s154 = smul.addr 4, 33
    %s155 = scalar_lea.vmem %s0, %s154
    %v156 = vld [vmem:[%s155] sm:%s3]
    %s157 = scalar_lea.vmem [#allocation0], 264
    %158 = vst [vmem:[%s157] sm:%s3] %v156
    %s159 = smul.addr 4, 32
    %s160 = scalar_lea.vmem %s0, %s159
    %v161 = vld [vmem:[%s160] sm:%s3]
    %s162 = scalar_lea.vmem [#allocation0], 256
    %163 = vst [vmem:[%s162] sm:%s3] %v161
    %s164 = smul.addr 4, 31
    %s165 = scalar_lea.vmem %s0, %s164
    %v166 = vld [vmem:[%s165] sm:%s3]
    %s167 = scalar_lea.vmem [#allocation0], 248
    %168 = vst [vmem:[%s167] sm:%s3] %v166
    %s169 = smul.addr 4, 30
    %s170 = scalar_lea.vmem %s0, %s169
    %v171 = vld [vmem:[%s170] sm:%s3]
    %s172 = scalar_lea.vmem [#allocation0], 240
    %173 = vst [vmem:[%s172] sm:%s3] %v171
    %s174 = smul.addr 4, 29
    %s175 = scalar_lea.vmem %s0, %s174
    %v176 = vld [vmem:[%s175] sm:%s3]
    %s177 = scalar_lea.vmem [#allocation0], 232
    %178 = vst [vmem:[%s177] sm:%s3] %v176
    %s179 = smul.addr 4, 28
    %s180 = scalar_lea.vmem %s0, %s179
    %v181 = vld [vmem:[%s180] sm:%s3]
    %s182 = scalar_lea.vmem [#allocation0], 224
    %183 = vst [vmem:[%s182] sm:%s3] %v181
    %s184 = smul.addr 4, 27
    %s185 = scalar_lea.vmem %s0, %s184
    %v186 = vld [vmem:[%s185] sm:%s3]
    %s187 = scalar_lea.vmem [#allocation0], 216
    %188 = vst [vmem:[%s187] sm:%s3] %v186
    %s189 = smul.addr 4, 26
    %s190 = scalar_lea.vmem %s0, %s189
    %v191 = vld [vmem:[%s190] sm:%s3]
    %s192 = scalar_lea.vmem [#allocation0], 208
    %193 = vst [vmem:[%s192] sm:%s3] %v191
    %s194 = smul.addr 4, 25
    %s195 = scalar_lea.vmem %s0, %s194
    %v196 = vld [vmem:[%s195] sm:%s3]
    %s197 = scalar_lea.vmem [#allocation0], 200
    %198 = vst [vmem:[%s197] sm:%s3] %v196
    %s199 = smul.addr 4, 24
    %s200 = scalar_lea.vmem %s0, %s199
    %v201 = vld [vmem:[%s200] sm:%s3]
    %s202 = scalar_lea.vmem [#allocation0], 192
    %203 = vst [vmem:[%s202] sm:%s3] %v201
    %s204 = smul.addr 4, 23
    %s205 = scalar_lea.vmem %s0, %s204
    %v206 = vld [vmem:[%s205] sm:%s3]
    %s207 = scalar_lea.vmem [#allocation0], 184
    %208 = vst [vmem:[%s207] sm:%s3] %v206
    %s209 = smul.addr 4, 22
    %s210 = scalar_lea.vmem %s0, %s209
    %v211 = vld [vmem:[%s210] sm:%s3]
    %s212 = scalar_lea.vmem [#allocation0], 176
    %213 = vst [vmem:[%s212] sm:%s3] %v211
    %s214 = smul.addr 4, 21
    %s215 = scalar_lea.vmem %s0, %s214
    %v216 = vld [vmem:[%s215] sm:%s3]
    %s217 = scalar_lea.vmem [#allocation0], 168
    %218 = vst [vmem:[%s217] sm:%s3] %v216
    %s219 = smul.addr 4, 20
    %s220 = scalar_lea.vmem %s0, %s219
    %v221 = vld [vmem:[%s220] sm:%s3]
    %s222 = scalar_lea.vmem [#allocation0], 160
    %223 = vst [vmem:[%s222] sm:%s3] %v221
    %s224 = smul.addr 4, 19
    %s225 = scalar_lea.vmem %s0, %s224
    %v226 = vld [vmem:[%s225] sm:%s3]
    %s227 = scalar_lea.vmem [#allocation0], 152
    %228 = vst [vmem:[%s227] sm:%s3] %v226
    %s229 = smul.addr 4, 18
    %s230 = scalar_lea.vmem %s0, %s229
    %v231 = vld [vmem:[%s230] sm:%s3]
    %s232 = scalar_lea.vmem [#allocation0], 144
    %233 = vst [vmem:[%s232] sm:%s3] %v231
    %s234 = smul.addr 4, 17
    %s235 = scalar_lea.vmem %s0, %s234
    %v236 = vld [vmem:[%s235] sm:%s3]
    %s237 = scalar_lea.vmem [#allocation0], 136
    %238 = vst [vmem:[%s237] sm:%s3] %v236
    %s239 = smul.addr 4, 16
    %s240 = scalar_lea.vmem %s0, %s239
    %v241 = vld [vmem:[%s240] sm:%s3]
    %s242 = scalar_lea.vmem [#allocation0], 128
    %243 = vst [vmem:[%s242] sm:%s3] %v241
    %s244 = smul.addr 4, 15
    %s245 = scalar_lea.vmem %s0, %s244
    %v246 = vld [vmem:[%s245] sm:%s3]
    %s247 = scalar_lea.vmem [#allocation0], 120
    %248 = vst [vmem:[%s247] sm:%s3] %v246
    %s249 = smul.addr 4, 14
    %s250 = scalar_lea.vmem %s0, %s249
    %v251 = vld [vmem:[%s250] sm:%s3]
    %s252 = scalar_lea.vmem [#allocation0], 112
    %253 = vst [vmem:[%s252] sm:%s3] %v251
    %s254 = smul.addr 4, 13
    %s255 = scalar_lea.vmem %s0, %s254
    %v256 = vld [vmem:[%s255] sm:%s3]
    %s257 = scalar_lea.vmem [#allocation0], 104
    %258 = vst [vmem:[%s257] sm:%s3] %v256
    %s259 = smul.addr 4, 12
    %s260 = scalar_lea.vmem %s0, %s259
    %v261 = vld [vmem:[%s260] sm:%s3]
    %s262 = scalar_lea.vmem [#allocation0], 96
    %263 = vst [vmem:[%s262] sm:%s3] %v261
    %s264 = smul.addr 4, 11
    %s265 = scalar_lea.vmem %s0, %s264
    %v266 = vld [vmem:[%s265] sm:%s3]
    %s267 = scalar_lea.vmem [#allocation0], 88
    %268 = vst [vmem:[%s267] sm:%s3] %v266
    %s269 = smul.addr 4, 10
    %s270 = scalar_lea.vmem %s0, %s269
    %v271 = vld [vmem:[%s270] sm:%s3]
    %s272 = scalar_lea.vmem [#allocation0], 80
    %273 = vst [vmem:[%s272] sm:%s3] %v271
    %s274 = smul.addr 4, 9
    %s275 = scalar_lea.vmem %s0, %s274
    %v276 = vld [vmem:[%s275] sm:%s3]
    %s277 = scalar_lea.vmem [#allocation0], 72
    %278 = vst [vmem:[%s277] sm:%s3] %v276
    %s279 = smul.addr 4, 8
    %s280 = scalar_lea.vmem %s0, %s279
    %v281 = vld [vmem:[%s280] sm:%s3]
    %s282 = scalar_lea.vmem [#allocation0], 64
    %283 = vst [vmem:[%s282] sm:%s3] %v281
    %s284 = smul.addr 4, 7
    %s285 = scalar_lea.vmem %s0, %s284
    %v286 = vld [vmem:[%s285] sm:%s3]
    %s287 = scalar_lea.vmem [#allocation0], 56
    %288 = vst [vmem:[%s287] sm:%s3] %v286
    %s289 = smul.addr 4, 6
    %s290 = scalar_lea.vmem %s0, %s289
    %v291 = vld [vmem:[%s290] sm:%s3]
    %s292 = scalar_lea.vmem [#allocation0], 48
    %293 = vst [vmem:[%s292] sm:%s3] %v291
    %s294 = smul.addr 4, 5
    %s295 = scalar_lea.vmem %s0, %s294
    %v296 = vld [vmem:[%s295] sm:%s3]
    %s297 = scalar_lea.vmem [#allocation0], 40
    %298 = vst [vmem:[%s297] sm:%s3] %v296
    %s299 = smul.addr 4, 4
    %s300 = scalar_lea.vmem %s0, %s299
    %v301 = vld [vmem:[%s300] sm:%s3]
    %s302 = scalar_lea.vmem [#allocation0], 32
    %303 = vst [vmem:[%s302] sm:%s3] %v301
    %s304 = smul.addr 4, 3
    %s305 = scalar_lea.vmem %s0, %s304
    %v306 = vld [vmem:[%s305] sm:%s3]
    %s307 = scalar_lea.vmem [#allocation0], 24
    %308 = vst [vmem:[%s307] sm:%s3] %v306
    %s309 = smul.addr 4, 2
    %s310 = scalar_lea.vmem %s0, %s309
    %v311 = vld [vmem:[%s310] sm:%s3]
    %s312 = scalar_lea.vmem [#allocation0], 16
    %313 = vst [vmem:[%s312] sm:%s3] %v311
    %s314 = scalar_lea.vmem %s0, 4
    %v315 = vld [vmem:[%s314] sm:%s3]
    %s316 = scalar_lea.vmem [#allocation0], 8
    %317 = vst [vmem:[%s316] sm:%s3] %v315
    %v318 = vld [vmem:[%s0] sm:%s3]
    %319 = vst [vmem:[#allocation0] sm:%s3] %v318
    %v320 = vld [vmem:[#allocation0] ss:$8 sm:$0xf]
    %v321 = vld [vmem:[#allocation0] ss:$8 sm:$0xf0]
    %vm322 = vcmask 1047556
    %v323 = vsel %vm322, %v321, %v320
    %vm324 = vcmask 130048
    %325 = vst.msk [vmem:[%s1] sm:$0xff] %vm324, %v323
    %s326 = scalar_lea.vmem [#allocation0], 64
    %v327 = vld [vmem:[%s326] ss:$8 sm:$0xf]
    %s328 = scalar_lea.vmem [#allocation0], 64
    %v329 = vld [vmem:[%s328] ss:$8 sm:$0xf0]
    %vm330 = vcmask 1047556
    %v331 = vsel %vm330, %v329, %v327
    %vm332 = vcmask 130048
    %s333 = scalar_lea.vmem %s1, 8
    %334 = vst.msk [vmem:[%s333] sm:$0xff] %vm332, %v331
    %s335 = scalar_lea.vmem [#allocation0], 128
    %v336 = vld [vmem:[%s335] ss:$8 sm:$0xf]
    %s337 = scalar_lea.vmem [#allocation0], 128
    %v338 = vld [vmem:[%s337] ss:$8 sm:$0xf0]
    %vm339 = vcmask 1047556
    %v340 = vsel %vm339, %v338, %v336
    %vm341 = vcmask 130048
    %s342 = scalar_lea.vmem %s1, 16
    %343 = vst.msk [vmem:[%s342] sm:$0xff] %vm341, %v340
    %s344 = scalar_lea.vmem [#allocation0], 192
    %v345 = vld [vmem:[%s344] ss:$8 sm:$0xf]
    %s346 = scalar_lea.vmem [#allocation0], 192
    %v347 = vld [vmem:[%s346] ss:$8 sm:$0xf0]
    %vm348 = vcmask 1047556
    %v349 = vsel %vm348, %v347, %v345
    %vm350 = vcmask 130048
    %s351 = scalar_lea.vmem %s1, 24
    %352 = vst.msk [vmem:[%s351] sm:$0xff] %vm350, %v349
    %s353 = scalar_lea.vmem [#allocation0], 256
    %v354 = vld [vmem:[%s353] ss:$8 sm:$0xf]
    %s355 = scalar_lea.vmem [#allocation0], 256
    %v356 = vld [vmem:[%s355] ss:$8 sm:$0xf0]
    %vm357 = vcmask 1047556
    %v358 = vsel %vm357, %v356, %v354
    %vm359 = vcmask 130048
    %s360 = scalar_lea.vmem %s1, 32
    %361 = vst.msk [vmem:[%s360] sm:$0xff] %vm359, %v358
    %s362 = scalar_lea.vmem [#allocation0], 320
    %v363 = vld [vmem:[%s362] ss:$8 sm:$0xf]
    %s364 = scalar_lea.vmem [#allocation0], 320
    %v365 = vld [vmem:[%s364] ss:$8 sm:$0xf0]
    %vm366 = vcmask 1047556
    %v367 = vsel %vm366, %v365, %v363
    %vm368 = vcmask 130048
    %s369 = scalar_lea.vmem %s1, 40
    %370 = vst.msk [vmem:[%s369] sm:$0xff] %vm368, %v367
    %s371 = scalar_lea.vmem [#allocation0], 384
    %v372 = vld [vmem:[%s371] ss:$8 sm:$0xf]
    %s373 = scalar_lea.vmem [#allocation0], 384
    %v374 = vld [vmem:[%s373] ss:$8 sm:$0xf0]
    %vm375 = vcmask 1047556
    %v376 = vsel %vm375, %v374, %v372
    %vm377 = vcmask 130048
    %s378 = scalar_lea.vmem %s1, 48
    %379 = vst.msk [vmem:[%s378] sm:$0xff] %vm377, %v376
    %s380 = scalar_lea.vmem [#allocation0], 448
    %v381 = vld [vmem:[%s380] ss:$8 sm:$0xf]
    %s382 = scalar_lea.vmem [#allocation0], 448
    %v383 = vld [vmem:[%s382] ss:$8 sm:$0xf0]
    %vm384 = vcmask 1047556
    %v385 = vsel %vm384, %v383, %v381
    %vm386 = vcmask 130048
    %s387 = scalar_lea.vmem %s1, 56
    %388 = vst.msk [vmem:[%s387] sm:$0xff] %vm386, %v385
    %s389 = scalar_lea.vmem [#allocation0], 3
    %v390 = vld [vmem:[%s389] ss:$8 sm:$0xf]
    %s391 = scalar_lea.vmem [#allocation0], 3
    %v392 = vld [vmem:[%s391] ss:$8 sm:$0xf0]
    %vm393 = vcmask 1047556
    %v394 = vsel %vm393, %v392, %v390
    %395 = vrot.lane.b32.xlu0 %v394, 48
    %v396 = vpop.permute.xlu0 %395
    %vm397 = vcmask 523648
    %398 = vst.msk [vmem:[%s1] sm:$0xff] %vm397, %v396
    %s399 = scalar_lea.vmem [#allocation0], 259
    %v400 = vld [vmem:[%s399] ss:$8 sm:$0xf]
    %s401 = scalar_lea.vmem [#allocation0], 259
    %v402 = vld [vmem:[%s401] ss:$8 sm:$0xf0]
    %vm403 = vcmask 1047556
    %v404 = vsel %vm403, %v402, %v400
    %405 = vrot.lane.b32.xlu0 %v404, 48
    %v406 = vpop.permute.xlu0 %405
    %vm407 = vcmask 523648
    %s408 = scalar_lea.vmem %s1, 32
    %409 = vst.msk [vmem:[%s408] sm:$0xff] %vm407, %v406
    %s410 = scalar_lea.vmem [#allocation0], 67
    %v411 = vld [vmem:[%s410] ss:$8 sm:$0xf]
    %s412 = scalar_lea.vmem [#allocation0], 67
    %v413 = vld [vmem:[%s412] ss:$8 sm:$0xf0]
    %vm414 = vcmask 1047556
    %v415 = vsel %vm414, %v413, %v411
    %416 = vrot.lane.b32.xlu0 %v415, 48
    %v417 = vpop.permute.xlu0 %416
    %vm418 = vcmask 523648
    %s419 = scalar_lea.vmem %s1, 8
    %420 = vst.msk [vmem:[%s419] sm:$0xff] %vm418, %v417
    %s421 = scalar_lea.vmem [#allocation0], 323
    %v422 = vld [vmem:[%s421] ss:$8 sm:$0xf]
    %s423 = scalar_lea.vmem [#allocation0], 323
    %v424 = vld [vmem:[%s423] ss:$8 sm:$0xf0]
    %vm425 = vcmask 1047556
    %v426 = vsel %vm425, %v424, %v422
    %427 = vrot.lane.b32.xlu0 %v426, 48
    %v428 = vpop.permute.xlu0 %427
    %vm429 = vcmask 523648
    %s430 = scalar_lea.vmem %s1, 40
    %431 = vst.msk [vmem:[%s430] sm:$0xff] %vm429, %v428
    %s432 = scalar_lea.vmem [#allocation0], 131
    %v433 = vld [vmem:[%s432] ss:$8 sm:$0xf]
    %s434 = scalar_lea.vmem [#allocation0], 131
    %v435 = vld [vmem:[%s434] ss:$8 sm:$0xf0]
    %vm436 = vcmask 1047556
    %v437 = vsel %vm436, %v435, %v433
    %438 = vrot.lane.b32.xlu0 %v437, 48
    %v439 = vpop.permute.xlu0 %438
    %vm440 = vcmask 523648
    %s441 = scalar_lea.vmem %s1, 16
    %442 = vst.msk [vmem:[%s441] sm:$0xff] %vm440, %v439
    %s443 = scalar_lea.vmem [#allocation0], 387
    %v444 = vld [vmem:[%s443] ss:$8 sm:$0xf]
    %s445 = scalar_lea.vmem [#allocation0], 387
    %v446 = vld [vmem:[%s445] ss:$8 sm:$0xf0]
    %vm447 = vcmask 1047556
    %v448 = vsel %vm447, %v446, %v444
    %449 = vrot.lane.b32.xlu0 %v448, 48
    %v450 = vpop.permute.xlu0 %449
    %vm451 = vcmask 523648
    %s452 = scalar_lea.vmem %s1, 48
    %453 = vst.msk [vmem:[%s452] sm:$0xff] %vm451, %v450
    %s454 = scalar_lea.vmem [#allocation0], 195
    %v455 = vld [vmem:[%s454] ss:$8 sm:$0xf]
    %s456 = scalar_lea.vmem [#allocation0], 195
    %v457 = vld [vmem:[%s456] ss:$8 sm:$0xf0]
    %vm458 = vcmask 1047556
    %v459 = vsel %vm458, %v457, %v455
    %460 = vrot.lane.b32.xlu0 %v459, 48
    %v461 = vpop.permute.xlu0 %460
    %vm462 = vcmask 523648
    %s463 = scalar_lea.vmem %s1, 24
    %464 = vst.msk [vmem:[%s463] sm:$0xff] %vm462, %v461
    %s465 = scalar_lea.vmem [#allocation0], 451
    %v466 = vld [vmem:[%s465] ss:$8 sm:$0xf]
    %s467 = scalar_lea.vmem [#allocation0], 451
    %v468 = vld [vmem:[%s467] ss:$8 sm:$0xf0]
    %vm469 = vcmask 1047556
    %v470 = vsel %vm469, %v468, %v466
    %471 = vrot.lane.b32.xlu0 %v470, 48
    %v472 = vpop.permute.xlu0 %471
    %vm473 = vcmask 523648
    %s474 = scalar_lea.vmem %s1, 56
    %475 = vst.msk [vmem:[%s474] sm:$0xff] %vm473, %v472
    %s476 = scalar_lea.vmem [#allocation0], 2
    %v477 = vld [vmem:[%s476] ss:$8 sm:$0xf]
    %s478 = scalar_lea.vmem [#allocation0], 2
    %v479 = vld [vmem:[%s478] ss:$8 sm:$0xf0]
    %vm480 = vcmask 1047556
    %v481 = vsel %vm480, %v479, %v477
    %482 = vrot.lane.b32.xlu0 %v481, 32
    %v483 = vpop.permute.xlu0 %482
    %vm484 = vcmask 392448
    %485 = vst.msk [vmem:[%s1] sm:$0xff] %vm484, %v483
    %s486 = scalar_lea.vmem [#allocation0], 258
    %v487 = vld [vmem:[%s486] ss:$8 sm:$0xf]
    %s488 = scalar_lea.vmem [#allocation0], 258
    %v489 = vld [vmem:[%s488] ss:$8 sm:$0xf0]
    %vm490 = vcmask 1047556
    %v491 = vsel %vm490, %v489, %v487
    %492 = vrot.lane.b32.xlu0 %v491, 32
    %v493 = vpop.permute.xlu0 %492
    %vm494 = vcmask 392448
    %s495 = scalar_lea.vmem %s1, 32
    %496 = vst.msk [vmem:[%s495] sm:$0xff] %vm494, %v493
    %s497 = scalar_lea.vmem [#allocation0], 66
    %v498 = vld [vmem:[%s497] ss:$8 sm:$0xf]
    %s499 = scalar_lea.vmem [#allocation0], 66
    %v500 = vld [vmem:[%s499] ss:$8 sm:$0xf0]
    %vm501 = vcmask 1047556
    %v502 = vsel %vm501, %v500, %v498
    %503 = vrot.lane.b32.xlu0 %v502, 32
    %v504 = vpop.permute.xlu0 %503
    %vm505 = vcmask 392448
    %s506 = scalar_lea.vmem %s1, 8
    %507 = vst.msk [vmem:[%s506] sm:$0xff] %vm505, %v504
    %s508 = scalar_lea.vmem [#allocation0], 322
    %v509 = vld [vmem:[%s508] ss:$8 sm:$0xf]
    %s510 = scalar_lea.vmem [#allocation0], 322
    %v511 = vld [vmem:[%s510] ss:$8 sm:$0xf0]
    %vm512 = vcmask 1047556
    %v513 = vsel %vm512, %v511, %v509
    %514 = vrot.lane.b32.xlu0 %v513, 32
    %v515 = vpop.permute.xlu0 %514
    %vm516 = vcmask 392448
    %s517 = scalar_lea.vmem %s1, 40
    %518 = vst.msk [vmem:[%s517] sm:$0xff] %vm516, %v515
    %s519 = scalar_lea.vmem [#allocation0], 130
    %v520 = vld [vmem:[%s519] ss:$8 sm:$0xf]
    %s521 = scalar_lea.vmem [#allocation0], 130
    %v522 = vld [vmem:[%s521] ss:$8 sm:$0xf0]
    %vm523 = vcmask 1047556
    %v524 = vsel %vm523, %v522, %v520
    %525 = vrot.lane.b32.xlu0 %v524, 32
    %v526 = vpop.permute.xlu0 %525
    %vm527 = vcmask 392448
    %s528 = scalar_lea.vmem %s1, 16
    %529 = vst.msk [vmem:[%s528] sm:$0xff] %vm527, %v526
    %s530 = scalar_lea.vmem [#allocation0], 386
    %v531 = vld [vmem:[%s530] ss:$8 sm:$0xf]
    %s532 = scalar_lea.vmem [#allocation0], 386
    %v533 = vld [vmem:[%s532] ss:$8 sm:$0xf0]
    %vm534 = vcmask 1047556
    %v535 = vsel %vm534, %v533, %v531
    %536 = vrot.lane.b32.xlu0 %v535, 32
    %v537 = vpop.permute.xlu0 %536
    %vm538 = vcmask 392448
    %s539 = scalar_lea.vmem %s1, 48
    %540 = vst.msk [vmem:[%s539] sm:$0xff] %vm538, %v537
    %s541 = scalar_lea.vmem [#allocation0], 194
    %v542 = vld [vmem:[%s541] ss:$8 sm:$0xf]
    %s543 = scalar_lea.vmem [#allocation0], 194
    %v544 = vld [vmem:[%s543] ss:$8 sm:$0xf0]
    %vm545 = vcmask 1047556
    %v546 = vsel %vm545, %v544, %v542
    %547 = vrot.lane.b32.xlu0 %v546, 32
    %v548 = vpop.permute.xlu0 %547
    %vm549 = vcmask 392448
    %s550 = scalar_lea.vmem %s1, 24
    %551 = vst.msk [vmem:[%s550] sm:$0xff] %vm549, %v548
    %s552 = scalar_lea.vmem [#allocation0], 450
    %v553 = vld [vmem:[%s552] ss:$8 sm:$0xf]
    %s554 = scalar_lea.vmem [#allocation0], 450
    %v555 = vld [vmem:[%s554] ss:$8 sm:$0xf0]
    %vm556 = vcmask 1047556
    %v557 = vsel %vm556, %v555, %v553
    %558 = vrot.lane.b32.xlu0 %v557, 32
    %v559 = vpop.permute.xlu0 %558
    %vm560 = vcmask 392448
    %s561 = scalar_lea.vmem %s1, 56
    %562 = vst.msk [vmem:[%s561] sm:$0xff] %vm560, %v559
    %s563 = scalar_lea.vmem [#allocation0], 1
    %v564 = vld [vmem:[%s563] ss:$8 sm:$0xf]
    %s565 = scalar_lea.vmem [#allocation0], 1
    %v566 = vld [vmem:[%s565] ss:$8 sm:$0xf0]
    %vm567 = vcmask 1047556
    %v568 = vsel %vm567, %v566, %v564
    %569 = vrot.lane.b32.xlu0 %v568, 16
    %v570 = vpop.permute.xlu0 %569
    %vm571 = vcmask 261248
    %572 = vst.msk [vmem:[%s1] sm:$0xff] %vm571, %v570
    %s573 = scalar_lea.vmem [#allocation0], 257
    %v574 = vld [vmem:[%s573] ss:$8 sm:$0xf]
    %s575 = scalar_lea.vmem [#allocation0], 257
    %v576 = vld [vmem:[%s575] ss:$8 sm:$0xf0]
    %vm577 = vcmask 1047556
    %v578 = vsel %vm577, %v576, %v574
    %579 = vrot.lane.b32.xlu0 %v578, 16
    %v580 = vpop.permute.xlu0 %579
    %vm581 = vcmask 261248
    %s582 = scalar_lea.vmem %s1, 32
    %583 = vst.msk [vmem:[%s582] sm:$0xff] %vm581, %v580
    %s584 = scalar_lea.vmem [#allocation0], 65
    %v585 = vld [vmem:[%s584] ss:$8 sm:$0xf]
    %s586 = scalar_lea.vmem [#allocation0], 65
    %v587 = vld [vmem:[%s586] ss:$8 sm:$0xf0]
    %vm588 = vcmask 1047556
    %v589 = vsel %vm588, %v587, %v585
    %590 = vrot.lane.b32.xlu0 %v589, 16
    %v591 = vpop.permute.xlu0 %590
    %vm592 = vcmask 261248
    %s593 = scalar_lea.vmem %s1, 8
    %594 = vst.msk [vmem:[%s593] sm:$0xff] %vm592, %v591
    %s595 = scalar_lea.vmem [#allocation0], 321
    %v596 = vld [vmem:[%s595] ss:$8 sm:$0xf]
    %s597 = scalar_lea.vmem [#allocation0], 321
    %v598 = vld [vmem:[%s597] ss:$8 sm:$0xf0]
    %vm599 = vcmask 1047556
    %v600 = vsel %vm599, %v598, %v596
    %601 = vrot.lane.b32.xlu0 %v600, 16
    %v602 = vpop.permute.xlu0 %601
    %vm603 = vcmask 261248
    %s604 = scalar_lea.vmem %s1, 40
    %605 = vst.msk [vmem:[%s604] sm:$0xff] %vm603, %v602
    %s606 = scalar_lea.vmem [#allocation0], 129
    %v607 = vld [vmem:[%s606] ss:$8 sm:$0xf]
    %s608 = scalar_lea.vmem [#allocation0], 129
    %v609 = vld [vmem:[%s608] ss:$8 sm:$0xf0]
    %vm610 = vcmask 1047556
    %v611 = vsel %vm610, %v609, %v607
    %612 = vrot.lane.b32.xlu0 %v611, 16
    %v613 = vpop.permute.xlu0 %612
    %vm614 = vcmask 261248
    %s615 = scalar_lea.vmem %s1, 16
    %616 = vst.msk [vmem:[%s615] sm:$0xff] %vm614, %v613
    %s617 = scalar_lea.vmem [#allocation0], 385
    %v618 = vld [vmem:[%s617] ss:$8 sm:$0xf]
    %s619 = scalar_lea.vmem [#allocation0], 385
    %v620 = vld [vmem:[%s619] ss:$8 sm:$0xf0]
    %vm621 = vcmask 1047556
    %v622 = vsel %vm621, %v620, %v618
    %623 = vrot.lane.b32.xlu0 %v622, 16
    %v624 = vpop.permute.xlu0 %623
    %vm625 = vcmask 261248
    %s626 = scalar_lea.vmem %s1, 48
    %627 = vst.msk [vmem:[%s626] sm:$0xff] %vm625, %v624
    %s628 = scalar_lea.vmem [#allocation0], 193
    %v629 = vld [vmem:[%s628] ss:$8 sm:$0xf]
    %s630 = scalar_lea.vmem [#allocation0], 193
    %v631 = vld [vmem:[%s630] ss:$8 sm:$0xf0]
    %vm632 = vcmask 1047556
    %v633 = vsel %vm632, %v631, %v629
    %634 = vrot.lane.b32.xlu0 %v633, 16
    %v635 = vpop.permute.xlu0 %634
    %vm636 = vcmask 261248
    %s637 = scalar_lea.vmem %s1, 24
    %638 = vst.msk [vmem:[%s637] sm:$0xff] %vm636, %v635
    %s639 = scalar_lea.vmem [#allocation0], 449
    %v640 = vld [vmem:[%s639] ss:$8 sm:$0xf]
    %s641 = scalar_lea.vmem [#allocation0], 449
    %v642 = vld [vmem:[%s641] ss:$8 sm:$0xf0]
    %vm643 = vcmask 1047556
    %v644 = vsel %vm643, %v642, %v640
    %645 = vrot.lane.b32.xlu0 %v644, 16
    %v646 = vpop.permute.xlu0 %645
    %vm647 = vcmask 261248
    %s648 = scalar_lea.vmem %s1, 56
    %649 = vst.msk [vmem:[%s648] sm:$0xff] %vm647, %v646

// kernel: bert_encoder_pallas.1
$region0: #{bert_encoder_pallas.1}
  #allocation0 [shape = 'u32[]', space=smem, size = 0x4, offset = 0x4, fixed_abs, tag = 'smem constant byte address 0x4 - core index']
  #allocation1 [shape = 'u32[144,128]{1,0:T(1,128)}', space=vmem, size = 0x12000, scoped, tag = 'internal scratch']
  %s0 = inlined_call_operand.vmem [shape: f32[16,32], index: 0, kind: input, shape index: {}]
  %s1 = inlined_call_operand.vmem [shape: f32[64,64], index: 1, kind: input, shape index: {}]
  %s2 = inlined_call_operand.vmem [shape: bf16[2,32,96], index: 2, kind: input, shape index: {}]
  %s3 = inlined_call_operand.vmem [shape: f32[2,1,96], index: 3, kind: input, shape index: {}]
  %s4 = inlined_call_operand.vmem [shape: bf16[2,32,32], index: 4, kind: input, shape index: {}]
  %s5 = inlined_call_operand.vmem [shape: f32[2,1,32], index: 5, kind: input, shape index: {}]
  %s6 = inlined_call_operand.vmem [shape: f32[2,1,32], index: 6, kind: input, shape index: {}]
  %s7 = inlined_call_operand.vmem [shape: f32[2,1,32], index: 7, kind: input, shape index: {}]
  %s8 = inlined_call_operand.vmem [shape: bf16[2,32,64], index: 8, kind: input, shape index: {}]
  %s9 = inlined_call_operand.vmem [shape: f32[2,1,64], index: 9, kind: input, shape index: {}]
  %s10 = inlined_call_operand.vmem [shape: bf16[2,64,32], index: 10, kind: input, shape index: {}]
  %s11 = inlined_call_operand.vmem [shape: f32[2,1,32], index: 11, kind: input, shape index: {}]
  %s12 = inlined_call_operand.vmem [shape: f32[2,1,32], index: 12, kind: input, shape index: {}]
  %s13 = inlined_call_operand.vmem [shape: f32[2,1,32], index: 13, kind: input, shape index: {}]
  %s14 = inlined_call_operand.vmem [shape: f32[2,16,32], index: 14, kind: output, shape index: {}]
  %s15 = sld [smem:[#allocation0]]
  $region66: #{bert_encoder_pallas.1} parent=0
    _
  %s17 = ssub.s32 1, %s15
  %s18 = scalar_select 0, %s17, %s15
  // Predicated region
  $region2: #{bert_encoder_pallas.1} parent=0 // pred_check
    _
  $region3: #{bert_encoder_pallas.1} parent=0 // pred_check_branch
    %20 = sbr.rel (0) target = $region5
  $region4: #{bert_encoder_pallas.1} parent=0 // pred_region
    _
  $region5: #{bert_encoder_pallas.1} parent=0 // pred_fallthru
    _
  // Predicated region
  $region6: #{bert_encoder_pallas.1} parent=0 // pred_check
    _
  $region7: #{bert_encoder_pallas.1} parent=0 // pred_check_branch
    %22 = sbr.rel (0) target = $region9
  $region8: #{bert_encoder_pallas.1} parent=0 // pred_region
    _
  $region9: #{bert_encoder_pallas.1} parent=0 // pred_fallthru
    _
  // Predicated region
  $region10: #{bert_encoder_pallas.1} parent=0 // pred_check
    _
  $region11: #{bert_encoder_pallas.1} parent=0 // pred_check_branch
    %24 = sbr.rel (0) target = $region13
  $region12: #{bert_encoder_pallas.1} parent=0 // pred_region
    _
  $region13: #{bert_encoder_pallas.1} parent=0 // pred_fallthru
    _
  // Predicated region
  $region14: #{bert_encoder_pallas.1} parent=0 // pred_check
    _
  $region15: #{bert_encoder_pallas.1} parent=0 // pred_check_branch
    %26 = sbr.rel (0) target = $region17
  $region16: #{bert_encoder_pallas.1} parent=0 // pred_region
    _
  $region17: #{bert_encoder_pallas.1} parent=0 // pred_fallthru
    _
  // Predicated region
  $region18: #{bert_encoder_pallas.1} parent=0 // pred_check
    _
  $region19: #{bert_encoder_pallas.1} parent=0 // pred_check_branch
    %28 = sbr.rel (0) target = $region21
  $region20: #{bert_encoder_pallas.1} parent=0 // pred_region
    _
  $region21: #{bert_encoder_pallas.1} parent=0 // pred_fallthru
    _
  // Predicated region
  $region22: #{bert_encoder_pallas.1} parent=0 // pred_check
    _
  $region23: #{bert_encoder_pallas.1} parent=0 // pred_check_branch
    %30 = sbr.rel (0) target = $region25
  $region24: #{bert_encoder_pallas.1} parent=0 // pred_region
    _
  $region25: #{bert_encoder_pallas.1} parent=0 // pred_fallthru
    _
  // Predicated region
  $region26: #{bert_encoder_pallas.1} parent=0 // pred_check
    _
  $region27: #{bert_encoder_pallas.1} parent=0 // pred_check_branch
    %32 = sbr.rel (0) target = $region29
  $region28: #{bert_encoder_pallas.1} parent=0 // pred_region
    _
  $region29: #{bert_encoder_pallas.1} parent=0 // pred_fallthru
    _
  // Predicated region
  $region30: #{bert_encoder_pallas.1} parent=0 // pred_check
    _
  $region31: #{bert_encoder_pallas.1} parent=0 // pred_check_branch
    %34 = sbr.rel (0) target = $region33
  $region32: #{bert_encoder_pallas.1} parent=0 // pred_region
    _
  $region33: #{bert_encoder_pallas.1} parent=0 // pred_fallthru
    _
  // Predicated region
  $region34: #{bert_encoder_pallas.1} parent=0 // pred_check
    _
  $region35: #{bert_encoder_pallas.1} parent=0 // pred_check_branch
    %36 = sbr.rel (0) target = $region37
  $region36: #{bert_encoder_pallas.1} parent=0 // pred_region
    _
  $region37: #{bert_encoder_pallas.1} parent=0 // pred_fallthru
    _
  // Predicated region
  $region38: #{bert_encoder_pallas.1} parent=0 // pred_check
    _
  $region39: #{bert_encoder_pallas.1} parent=0 // pred_check_branch
    %38 = sbr.rel (0) target = $region41
  $region40: #{bert_encoder_pallas.1} parent=0 // pred_region
    _
  $region41: #{bert_encoder_pallas.1} parent=0 // pred_fallthru
    _
  // Predicated region
  $region42: #{bert_encoder_pallas.1} parent=0 // pred_check
    _
  $region43: #{bert_encoder_pallas.1} parent=0 // pred_check_branch
    %40 = sbr.rel (0) target = $region45
  $region44: #{bert_encoder_pallas.1} parent=0 // pred_region
    _
  $region45: #{bert_encoder_pallas.1} parent=0 // pred_fallthru
    _
  // Predicated region
  $region46: #{bert_encoder_pallas.1} parent=0 // pred_check
    _
  $region47: #{bert_encoder_pallas.1} parent=0 // pred_check_branch
    %42 = sbr.rel (0) target = $region49
  $region48: #{bert_encoder_pallas.1} parent=0 // pred_region
    _
  $region49: #{bert_encoder_pallas.1} parent=0 // pred_fallthru
    _
  // Predicated region
  $region50: #{bert_encoder_pallas.1} parent=0 // pred_check
    _
  $region51: #{bert_encoder_pallas.1} parent=0 // pred_check_branch
    %44 = sbr.rel (0) target = $region53
  $region52: #{bert_encoder_pallas.1} parent=0 // pred_region
    _
  $region53: #{bert_encoder_pallas.1} parent=0 // pred_fallthru
    _
  // Predicated region
  $region54: #{bert_encoder_pallas.1} parent=0 // pred_check
    _
  $region55: #{bert_encoder_pallas.1} parent=0 // pred_check_branch
    %46 = sbr.rel (0) target = $region57
  $region56: #{bert_encoder_pallas.1} parent=0 // pred_region
    _
  $region57: #{bert_encoder_pallas.1} parent=0 // pred_fallthru
    _
  %v48 = vld [vmem:[%s0] sm:$0xff]
  %v49 = vld [vmem:[%s0 + $0x8] sm:$0xff]
  %v50 = vld [vmem:[%s1] sm:$0xff]
  %v51 = vld [vmem:[%s1 + $0x8] sm:$0xff]
  %v52 = vld [vmem:[%s1 + $0x10] sm:$0xff]
  %v53 = vld [vmem:[%s1 + $0x18] sm:$0xff]
  %v54 = vld [vmem:[%s1 + $0x20] sm:$0xff]
  %v55 = vld [vmem:[%s1 + $0x28] sm:$0xff]
  %v56 = vld [vmem:[%s1 + $0x30] sm:$0xff]
  %v57 = vld [vmem:[%s1 + $0x38] sm:$0xff]
  %v58 = vpack.c.bf16 %v49, %v48
  %v59 = vld [vmem:[%s2] sm:$0xf]
  %v60 = vld [vmem:[%s2 + $0x4] sm:$0xf]
  %v61 = vld [vmem:[%s2 + $0x8] sm:$0xf]
  %v62 = vld [vmem:[%s2 + $0xc] sm:$0xf]
  %v63 = vld [vmem:[%s3] sm:$0x1]
  %v65 = vlaneseq
  %v66 = vshrl.u32 %v65, 7
  %v67 = vsub.s32 0, %v66
  %v68 = vrot.slane %v63, %v67
  %v74 = vunpack.c.l.b16 %v59
  %v75 = vunpack.c.l.b16 %v60
  %v76 = vunpack.c.l.b16 %v61
  %v77 = vunpack.c.l.b16 %v62
  %v78 = vpack.c.b16 %v75, %v74
  %v79 = vpack.c.b16 %v77, %v76
  %vm82 = vcmask 261120
  %v84 = vsel %vm82, %v58, 0
  %86 = vmatprep.subr.bf16.mxu0 0
  %87 = vmatpush1.bf16.msra.mxu0 %v78
  %88 = vmatprep.subr.bf16.mxu0 0
  %89 = vmatpush1.bf16.msra.mxu0 %v79
  %90 = vmatprep.subr.bf16.mxu0 0
  %91 = vmatpush1.bf16.msra.mxu0 0
  %92 = vmatprep.subr.bf16.mxu0 0
  %93 = vmatpush1.bf16.msra.mxu0 0
  %94 = vmatprep.subr.bf16.mxu0 0
  %95 = vmatpush1.bf16.msra.mxu0 0
  %96 = vmatprep.subr.bf16.mxu0 0
  %97 = vmatpush1.bf16.msra.mxu0 0
  %98 = vmatprep.subr.bf16.mxu0 0
  %99 = vmatpush1.bf16.msra.mxu0 0
  %100 = vmatprep.subr.bf16.mxu0 0
  %101 = vmatpush1.bf16.msra.mxu0 0
  %102 = vmatprep.subr.bf16.mxu0 0
  %103 = vmatpush1.bf16.msra.mxu0 0
  %104 = vmatprep.subr.bf16.mxu0 0
  %105 = vmatpush1.bf16.msra.mxu0 0
  %106 = vmatprep.subr.bf16.mxu0 0
  %107 = vmatpush1.bf16.msra.mxu0 0
  %108 = vmatprep.subr.bf16.mxu0 0
  %109 = vmatpush1.bf16.msra.mxu0 0
  %110 = vmatprep.subr.bf16.mxu0 0
  %111 = vmatpush1.bf16.msra.mxu0 0
  %112 = vmatprep.subr.bf16.mxu0 0
  %113 = vmatpush1.bf16.msra.mxu0 0
  %114 = vmatprep.subr.bf16.mxu0 0
  %115 = vmatpush1.bf16.msra.mxu0 0
  %116 = vmatprep.subr.bf16.mxu0 0
  %117 = vmatpush1.bf16.msra.mxu0 0
  %118 = vmatprep.mubr.bf16.mxu0 0
  %119 = vmatmul.mubr.bf16.gmra.mrb[0].mxu0 %v84
  %v120 = vpop.f32.mrb[0].mxu0
  %v121 = vadd.f32 %v68, %v120
  %v122 = vpop.f32.mrb[0].mxu0
  %v123 = vpop.f32.mrb[0].mxu0
  %v124 = vadd.f32 %v68, %v123
  %v125 = vpop.f32.mrb[0].mxu0
  %126 = vdwg.mxu0
  %129 = vrot.lane.b32.xlu0 %v121, 120
  %v130 = vpop.permute.xlu0 %129
  %131 = vrot.lane.b32.xlu0 %v124, 120
  %v132 = vpop.permute.xlu0 %131
  %135 = vrot.lane.b32.xlu0 %v121, 112
  %v136 = vpop.permute.xlu0 %135
  %137 = vrot.lane.b32.xlu0 %v124, 112
  %v138 = vpop.permute.xlu0 %137
  %141 = vrot.lane.b32.xlu0 %v121, 104
  %v142 = vpop.permute.xlu0 %141
  %143 = vrot.lane.b32.xlu0 %v124, 104
  %v144 = vpop.permute.xlu0 %143
  %v147 = vpack.c.bf16 %v124, %v121
  %v148 = vpack.c.bf16 %v132, %v130
  %v149 = vpack.c.bf16 %v138, %v136
  %v150 = vpack.c.bf16 %v144, %v142
  %155 = vrot.lane.b32.xlu0 %v147, 96
  %v156 = vpop.permute.xlu0 %155
  %157 = vrot.lane.b32.xlu0 %v148, 96
  %v158 = vpop.permute.xlu0 %157
  %159 = vrot.lane.b32.xlu0 %v149, 96
  %v160 = vpop.permute.xlu0 %159
  %161 = vrot.lane.b32.xlu0 %v150, 96
  %v162 = vpop.permute.xlu0 %161
  %vm163 = vcmask 64512
  %v165 = vsel %vm163, %v147, 0
  %v168 = vsel %vm163, %v148, 0
  %v171 = vsel %vm163, %v149, 0
  %v174 = vsel %vm163, %v150, 0
  %v177 = vsel %vm163, %v156, 0
  %v180 = vsel %vm163, %v158, 0
  %v183 = vsel %vm163, %v160, 0
  %v186 = vsel %vm163, %v162, 0
  %188 = vmatprep.subr.bf16.mxu0 0
  %189 = vmatpush1.bf16.xpose.msra.mxu0 %v177
  %190 = vmatprep.subr.bf16.mxu0 0
  %191 = vmatpush1.bf16.xpose.msra.mxu0 %v180
  %192 = vmatprep.subr.bf16.mxu0 0
  %193 = vmatpush1.bf16.xpose.msra.mxu0 %v183
  %194 = vmatprep.subr.bf16.mxu0 0
  %195 = vmatpush1.bf16.xpose.msra.mxu0 %v186
  %196 = vmatprep.subr.bf16.mxu0 0
  %197 = vmatpush1.bf16.xpose.msra.mxu0 0
  %198 = vmatprep.subr.bf16.mxu0 0
  %199 = vmatpush1.bf16.xpose.msra.mxu0 0
  %200 = vmatprep.subr.bf16.mxu0 0
  %201 = vmatpush1.bf16.xpose.msra.mxu0 0
  %202 = vmatprep.subr.bf16.mxu0 0
  %203 = vmatpush1.bf16.xpose.msra.mxu0 0
  %204 = vmatprep.subr.bf16.mxu0 0
  %205 = vmatpush1.bf16.xpose.msra.mxu0 0
  %206 = vmatprep.subr.bf16.mxu0 0
  %207 = vmatpush1.bf16.xpose.msra.mxu0 0
  %208 = vmatprep.subr.bf16.mxu0 0
  %209 = vmatpush1.bf16.xpose.msra.mxu0 0
  %210 = vmatprep.subr.bf16.mxu0 0
  %211 = vmatpush1.bf16.xpose.msra.mxu0 0
  %212 = vmatprep.subr.bf16.mxu0 0
  %213 = vmatpush1.bf16.xpose.msra.mxu0 0
  %214 = vmatprep.subr.bf16.mxu0 0
  %215 = vmatpush1.bf16.xpose.msra.mxu0 0
  %216 = vmatprep.subr.bf16.mxu0 0
  %217 = vmatpush1.bf16.xpose.msra.mxu0 0
  %218 = vmatprep.subr.bf16.mxu0 0
  %219 = vmatpush1.bf16.xpose.msra.mxu0 0
  %220 = vmatprep.mubr.bf16.mxu0 0
  %221 = vmatmul.mubr.bf16.gmra.mrb[0].mxu0 %v165
  %v222 = vpop.f32.mrb[0].mxu0
  %v223 = vadd.f32 %v50, %v222
  %v224 = vpop.f32.mrb[0].mxu0
  %v225 = vpop.f32.mrb[0].mxu0
  %v226 = vadd.f32 %v51, %v225
  %v227 = vpop.f32.mrb[0].mxu0
  %228 = vmatprep.mubr.bf16.mxu0 0
  %229 = vmatmul.mubr.bf16.gmra.mrb[0].mxu0 %v168
  %v230 = vpop.f32.mrb[0].mxu0
  %v231 = vadd.f32 %v52, %v230
  %v232 = vpop.f32.mrb[0].mxu0
  %v233 = vpop.f32.mrb[0].mxu0
  %v234 = vadd.f32 %v53, %v233
  %v235 = vpop.f32.mrb[0].mxu0
  %236 = vmatprep.mubr.bf16.mxu0 0
  %237 = vmatmul.mubr.bf16.gmra.mrb[0].mxu0 %v171
  %v238 = vpop.f32.mrb[0].mxu0
  %v239 = vadd.f32 %v54, %v238
  %v240 = vpop.f32.mrb[0].mxu0
  %v241 = vpop.f32.mrb[0].mxu0
  %v242 = vadd.f32 %v55, %v241
  %v243 = vpop.f32.mrb[0].mxu0
  %244 = vmatprep.mubr.bf16.mxu0 0
  %245 = vmatmul.mubr.bf16.gmra.mrb[0].mxu0 %v174
  %v246 = vpop.f32.mrb[0].mxu0
  %v247 = vadd.f32 %v56, %v246
  %v248 = vpop.f32.mrb[0].mxu0
  %v249 = vpop.f32.mrb[0].mxu0
  %v250 = vadd.f32 %v57, %v249
  %v251 = vpop.f32.mrb[0].mxu0
  %252 = vdwg.mxu0
  %vm253 = vcmask 523264
  %v254 = vsel %vm253, %v223, -inf
  %255 = vmax.xlane.f32.xlu0 %v254
  %v256 = vpop.xlane.xlu0 %255
  %v257 = vsel %vm253, %v226, -inf
  %258 = vmax.xlane.f32.xlu0 %v257
  %v259 = vpop.xlane.xlu0 %258
  %v260 = vsel %vm253, %v231, -inf
  %261 = vmax.xlane.f32.xlu0 %v260
  %v262 = vpop.xlane.xlu0 %261
  %v263 = vsel %vm253, %v234, -inf
  %264 = vmax.xlane.f32.xlu0 %v263
  %v265 = vpop.xlane.xlu0 %264
  %v266 = vsel %vm253, %v239, -inf
  %267 = vmax.xlane.f32.xlu0 %v266
  %v268 = vpop.xlane.xlu0 %267
  %v269 = vsel %vm253, %v242, -inf
  %270 = vmax.xlane.f32.xlu0 %v269
  %v271 = vpop.xlane.xlu0 %270
  %v272 = vsel %vm253, %v247, -inf
  %273 = vmax.xlane.f32.xlu0 %v272
  %v274 = vpop.xlane.xlu0 %273
  %v275 = vsel %vm253, %v250, -inf
  %276 = vmax.xlane.f32.xlu0 %v275
  %v277 = vpop.xlane.xlu0 %276
  %v278 = vsub.f32 %v223, %v256
  %v279 = vsub.f32 %v226, %v259
  %v280 = vsub.f32 %v231, %v262
  %v281 = vsub.f32 %v234, %v265
  %v282 = vsub.f32 %v239, %v268
  %v283 = vsub.f32 %v242, %v271
  %v284 = vsub.f32 %v247, %v274
  %v285 = vsub.f32 %v250, %v277
  %v286 = vmul.f32 %v278, 1.442695
  %v287 = vpow.pop %v286
  %v288 = vmul.f32 %v279, 1.442695
  %v289 = vpow.pop %v288
  %v290 = vmul.f32 %v280, 1.442695
  %v291 = vpow.pop %v290
  %v292 = vmul.f32 %v281, 1.442695
  %v293 = vpow.pop %v292
  %v294 = vmul.f32 %v282, 1.442695
  %v295 = vpow.pop %v294
  %v296 = vmul.f32 %v283, 1.442695
  %v297 = vpow.pop %v296
  %v298 = vmul.f32 %v284, 1.442695
  %v299 = vpow.pop %v298
  %v300 = vmul.f32 %v285, 1.442695
  %v301 = vpow.pop %v300
  %v302 = vsel %vm253, %v287, 0.0
  %303 = vadd.xlane.f32.xlu0 %v302
  %v304 = vpop.xlane.xlu0 %303
  %v305 = vsel %vm253, %v289, 0.0
  %306 = vadd.xlane.f32.xlu0 %v305
  %v307 = vpop.xlane.xlu0 %306
  %v308 = vsel %vm253, %v291, 0.0
  %309 = vadd.xlane.f32.xlu0 %v308
  %v310 = vpop.xlane.xlu0 %309
  %v311 = vsel %vm253, %v293, 0.0
  %312 = vadd.xlane.f32.xlu0 %v311
  %v313 = vpop.xlane.xlu0 %312
  %v314 = vsel %vm253, %v295, 0.0
  %315 = vadd.xlane.f32.xlu0 %v314
  %v316 = vpop.xlane.xlu0 %315
  %v317 = vsel %vm253, %v297, 0.0
  %318 = vadd.xlane.f32.xlu0 %v317
  %v319 = vpop.xlane.xlu0 %318
  %v320 = vsel %vm253, %v299, 0.0
  %321 = vadd.xlane.f32.xlu0 %v320
  %v322 = vpop.xlane.xlu0 %321
  %v323 = vsel %vm253, %v301, 0.0
  %324 = vadd.xlane.f32.xlu0 %v323
  %v325 = vpop.xlane.xlu0 %324
  %v326 = vpack.c.bf16 %v289, %v287
  %v327 = vpack.c.bf16 %v293, %v291
  %v328 = vpack.c.bf16 %v297, %v295
  %v329 = vpack.c.bf16 %v301, %v299
  %330 = vrot.lane.b32.xlu0 %v147, 64
  %v331 = vpop.permute.xlu0 %330
  %332 = vrot.lane.b32.xlu0 %v148, 64
  %v333 = vpop.permute.xlu0 %332
  %334 = vrot.lane.b32.xlu0 %v149, 64
  %v335 = vpop.permute.xlu0 %334
  %336 = vrot.lane.b32.xlu0 %v150, 64
  %v337 = vpop.permute.xlu0 %336
  %v343 = vsel %vm253, %v326, 0
  %v346 = vsel %vm253, %v327, 0
  %v349 = vsel %vm253, %v328, 0
  %v352 = vsel %vm253, %v329, 0
  %354 = vmatprep.subr.bf16.mxu0 0
  %355 = vmatpush1.bf16.msra.mxu0 %v331
  %356 = vmatprep.subr.bf16.mxu0 0
  %357 = vmatpush1.bf16.msra.mxu0 %v333
  %358 = vmatprep.subr.bf16.mxu0 0
  %359 = vmatpush1.bf16.msra.mxu0 %v335
  %360 = vmatprep.subr.bf16.mxu0 0
  %361 = vmatpush1.bf16.msra.mxu0 %v337
  %362 = vmatprep.subr.bf16.mxu0 0
  %363 = vmatpush1.bf16.msra.mxu0 0
  %364 = vmatprep.subr.bf16.mxu0 0
  %365 = vmatpush1.bf16.msra.mxu0 0
  %366 = vmatprep.subr.bf16.mxu0 0
  %367 = vmatpush1.bf16.msra.mxu0 0
  %368 = vmatprep.subr.bf16.mxu0 0
  %369 = vmatpush1.bf16.msra.mxu0 0
  %370 = vmatprep.subr.bf16.mxu0 0
  %371 = vmatpush1.bf16.msra.mxu0 0
  %372 = vmatprep.subr.bf16.mxu0 0
  %373 = vmatpush1.bf16.msra.mxu0 0
  %374 = vmatprep.subr.bf16.mxu0 0
  %375 = vmatpush1.bf16.msra.mxu0 0
  %376 = vmatprep.subr.bf16.mxu0 0
  %377 = vmatpush1.bf16.msra.mxu0 0
  %378 = vmatprep.subr.bf16.mxu0 0
  %379 = vmatpush1.bf16.msra.mxu0 0
  %380 = vmatprep.subr.bf16.mxu0 0
  %381 = vmatpush1.bf16.msra.mxu0 0
  %382 = vmatprep.subr.bf16.mxu0 0
  %383 = vmatpush1.bf16.msra.mxu0 0
  %384 = vmatprep.subr.bf16.mxu0 0
  %385 = vmatpush1.bf16.msra.mxu0 0
  %386 = vmatprep.mubr.bf16.mxu0 0
  %387 = vmatmul.mubr.bf16.gmra.mrb[0].mxu0 %v343
  %v388 = vpop.f32.mrb[0].mxu0
  %v389 = vadd.f32 0.0, %v388
  %v390 = vpop.f32.mrb[0].mxu0
  %v391 = vpop.f32.mrb[0].mxu0
  %v392 = vadd.f32 0.0, %v391
  %v393 = vpop.f32.mrb[0].mxu0
  %394 = vmatprep.mubr.bf16.mxu0 0
  %395 = vmatmul.mubr.bf16.gmra.mrb[0].mxu0 %v346
  %v396 = vpop.f32.mrb[0].mxu0
  %v397 = vadd.f32 0.0, %v396
  %v398 = vpop.f32.mrb[0].mxu0
  %v399 = vpop.f32.mrb[0].mxu0
  %v400 = vadd.f32 0.0, %v399
  %v401 = vpop.f32.mrb[0].mxu0
  %402 = vmatprep.mubr.bf16.mxu0 0
  %403 = vmatmul.mubr.bf16.gmra.mrb[0].mxu0 %v349
  %v404 = vpop.f32.mrb[0].mxu0
  %v405 = vadd.f32 0.0, %v404
  %v406 = vpop.f32.mrb[0].mxu0
  %v407 = vpop.f32.mrb[0].mxu0
  %v408 = vadd.f32 0.0, %v407
  %v409 = vpop.f32.mrb[0].mxu0
  %410 = vmatprep.mubr.bf16.mxu0 0
  %411 = vmatmul.mubr.bf16.gmra.mrb[0].mxu0 %v352
  %v412 = vpop.f32.mrb[0].mxu0
  %v413 = vadd.f32 0.0, %v412
  %v414 = vpop.f32.mrb[0].mxu0
  %v415 = vpop.f32.mrb[0].mxu0
  %v416 = vadd.f32 0.0, %v415
  %v417 = vpop.f32.mrb[0].mxu0
  %418 = vdwg.mxu0
  %v419 = vrcp.pop %v304
  %v420 = vrcp.pop %v307
  %v421 = vrcp.pop %v310
  %v422 = vrcp.pop %v313
  %v423 = vrcp.pop %v316
  %v424 = vrcp.pop %v319
  %v425 = vrcp.pop %v322
  %v426 = vrcp.pop %v325
  %v427 = vmul.f32 %v389, %v419
  %v428 = vmul.f32 %v392, %v420
  %v429 = vmul.f32 %v397, %v421
  %v430 = vmul.f32 %v400, %v422
  %v431 = vmul.f32 %v405, %v423
  %v432 = vmul.f32 %v408, %v424
  %v433 = vmul.f32 %v413, %v425
  %v434 = vmul.f32 %v416, %v426
  %437 = vrot.lane.b32.xlu0 %v429, 8
  %v438 = vpop.permute.xlu0 %437
  %439 = vrot.lane.b32.xlu0 %v430, 8
  %v440 = vpop.permute.xlu0 %439
  %445 = vrot.lane.b32.xlu0 %v431, 16
  %v446 = vpop.permute.xlu0 %445
  %447 = vrot.lane.b32.xlu0 %v432, 16
  %v448 = vpop.permute.xlu0 %447
  %453 = vrot.lane.b32.xlu0 %v433, 24
  %v454 = vpop.permute.xlu0 %453
  %455 = vrot.lane.b32.xlu0 %v434, 24
  %v456 = vpop.permute.xlu0 %455
  %v459 = vsel %vm163, %v427, %v438
  %v460 = vsel %vm163, %v428, %v440
  %vm461 = vcmask 130048
  %v462 = vsel %vm461, %v459, %v446
  %v463 = vsel %vm461, %v460, %v448
  %vm464 = vcmask 195584
  %v465 = vsel %vm464, %v462, %v454
  %v466 = vsel %vm464, %v463, %v456
  %v467 = vpack.c.bf16 %v466, %v465
  %v468 = vld [vmem:[%s4] sm:$0xf]
  %v469 = vld [vmem:[%s4 + $0x4] sm:$0xf]
  %v470 = vld [vmem:[%s4 + $0x8] sm:$0xf]
  %v471 = vld [vmem:[%s4 + $0xc] sm:$0xf]
  %v472 = vld [vmem:[%s5] sm:$0x1]
  %v474 = vlaneseq
  %v475 = vshrl.u32 %v474, 7
  %v476 = vsub.s32 0, %v475
  %v477 = vrot.slane %v472, %v476
  %v483 = vunpack.c.l.b16 %v468
  %v484 = vunpack.c.l.b16 %v469
  %v485 = vunpack.c.l.b16 %v470
  %v486 = vunpack.c.l.b16 %v471
  %v487 = vpack.c.b16 %v484, %v483
  %v488 = vpack.c.b16 %v486, %v485
  %v492 = vsel %vm82, %v467, 0
  %494 = vmatprep.subr.bf16.mxu0 0
  %495 = vmatpush1.bf16.msra.mxu0 %v487
  %496 = vmatprep.subr.bf16.mxu0 0
  %497 = vmatpush1.bf16.msra.mxu0 %v488
  %498 = vmatprep.subr.bf16.mxu0 0
  %499 = vmatpush1.bf16.msra.mxu0 0
  %500 = vmatprep.subr.bf16.mxu0 0
  %501 = vmatpush1.bf16.msra.mxu0 0
  %502 = vmatprep.subr.bf16.mxu0 0
  %503 = vmatpush1.bf16.msra.mxu0 0
  %504 = vmatprep.subr.bf16.mxu0 0
  %505 = vmatpush1.bf16.msra.mxu0 0
  %506 = vmatprep.subr.bf16.mxu0 0
  %507 = vmatpush1.bf16.msra.mxu0 0
  %508 = vmatprep.subr.bf16.mxu0 0
  %509 = vmatpush1.bf16.msra.mxu0 0
  %510 = vmatprep.subr.bf16.mxu0 0
  %511 = vmatpush1.bf16.msra.mxu0 0
  %512 = vmatprep.subr.bf16.mxu0 0
  %513 = vmatpush1.bf16.msra.mxu0 0
  %514 = vmatprep.subr.bf16.mxu0 0
  %515 = vmatpush1.bf16.msra.mxu0 0
  %516 = vmatprep.subr.bf16.mxu0 0
  %517 = vmatpush1.bf16.msra.mxu0 0
  %518 = vmatprep.subr.bf16.mxu0 0
  %519 = vmatpush1.bf16.msra.mxu0 0
  %520 = vmatprep.subr.bf16.mxu0 0
  %521 = vmatpush1.bf16.msra.mxu0 0
  %522 = vmatprep.subr.bf16.mxu0 0
  %523 = vmatpush1.bf16.msra.mxu0 0
  %524 = vmatprep.subr.bf16.mxu0 0
  %525 = vmatpush1.bf16.msra.mxu0 0
  %526 = vmatprep.mubr.bf16.mxu0 0
  %527 = vmatmul.mubr.bf16.gmra.mrb[0].mxu0 %v492
  %v528 = vpop.f32.mrb[0].mxu0
  %v529 = vadd.f32 %v477, %v528
  %v530 = vpop.f32.mrb[0].mxu0
  %v531 = vpop.f32.mrb[0].mxu0
  %v532 = vadd.f32 %v477, %v531
  %v533 = vpop.f32.mrb[0].mxu0
  %534 = vdwg.mxu0
  %v535 = vadd.f32 %v529, %v48
  %v536 = vadd.f32 %v532, %v49
  %v537 = vld [vmem:[%s6] sm:$0x1]
  %v538 = vld [vmem:[%s7] sm:$0x1]
  %v539 = vsel %vm82, %v535, 0.0
  %540 = vadd.xlane.f32.xlu0 %v539
  %v541 = vpop.xlane.xlu0 %540
  %v542 = vsel %vm82, %v536, 0.0
  %543 = vadd.xlane.f32.xlu0 %v542
  %v544 = vpop.xlane.xlu0 %543
  %v545 = vrcp.pop 32.0
  %v546 = vmul.f32 %v541, %v545
  %v547 = vmul.f32 %v544, %v545
  %v548 = vsub.f32 %v535, %v546
  %v549 = vsub.f32 %v536, %v547
  %v550 = vmul.f32 %v548, %v548
  %v551 = vmul.f32 %v549, %v549
  %v552 = vsel %vm82, %v550, 0.0
  %553 = vadd.xlane.f32.xlu0 %v552
  %v554 = vpop.xlane.xlu0 %553
  %v555 = vsel %vm82, %v551, 0.0
  %556 = vadd.xlane.f32.xlu0 %v555
  %v557 = vpop.xlane.xlu0 %556
  %v558 = vmul.f32 %v554, %v545
  %v559 = vmul.f32 %v557, %v545
  %v560 = vadd.f32 %v558, 1e-05
  %v561 = vadd.f32 %v559, 1e-05
  %v562 = vrsqrt.pop %v560
  %v563 = vrsqrt.pop %v561
  %v564 = vmul.f32 %v548, %v562
  %v565 = vmul.f32 %v549, %v563
  %v567 = vlaneseq
  %v568 = vshrl.u32 %v567, 7
  %v569 = vsub.s32 0, %v568
  %v570 = vrot.slane %v537, %v569
  %v572 = vmul.f32 %v570, %v564
  %v573 = vmul.f32 %v570, %v565
  %v575 = vlaneseq
  %v576 = vshrl.u32 %v575, 7
  %v577 = vsub.s32 0, %v576
  %v578 = vrot.slane %v538, %v577
  %v580 = vadd.f32 %v572, %v578
  %v581 = vadd.f32 %v573, %v578
  %v582 = vpack.c.bf16 %v581, %v580
  %v583 = vld [vmem:[%s8] sm:$0xf]
  %v584 = vld [vmem:[%s8 + $0x4] sm:$0xf]
  %v585 = vld [vmem:[%s8 + $0x8] sm:$0xf]
  %v586 = vld [vmem:[%s8 + $0xc] sm:$0xf]
  %v587 = vld [vmem:[%s9] sm:$0x1]
  %v589 = vlaneseq
  %v590 = vshrl.u32 %v589, 7
  %v591 = vsub.s32 0, %v590
  %v592 = vrot.slane %v587, %v591
  %v598 = vunpack.c.l.b16 %v583
  %v599 = vunpack.c.l.b16 %v584
  %v600 = vunpack.c.l.b16 %v585
  %v601 = vunpack.c.l.b16 %v586
  %v602 = vpack.c.b16 %v599, %v598
  %v603 = vpack.c.b16 %v601, %v600
  %v607 = vsel %vm82, %v582, 0
  %609 = vmatprep.subr.bf16.mxu0 0
  %610 = vmatpush1.bf16.msra.mxu0 %v602
  %611 = vmatprep.subr.bf16.mxu0 0
  %612 = vmatpush1.bf16.msra.mxu0 %v603
  %613 = vmatprep.subr.bf16.mxu0 0
  %614 = vmatpush1.bf16.msra.mxu0 0
  %615 = vmatprep.subr.bf16.mxu0 0
  %616 = vmatpush1.bf16.msra.mxu0 0
  %617 = vmatprep.subr.bf16.mxu0 0
  %618 = vmatpush1.bf16.msra.mxu0 0
  %619 = vmatprep.subr.bf16.mxu0 0
  %620 = vmatpush1.bf16.msra.mxu0 0
  %621 = vmatprep.subr.bf16.mxu0 0
  %622 = vmatpush1.bf16.msra.mxu0 0
  %623 = vmatprep.subr.bf16.mxu0 0
  %624 = vmatpush1.bf16.msra.mxu0 0
  %625 = vmatprep.subr.bf16.mxu0 0
  %626 = vmatpush1.bf16.msra.mxu0 0
  %627 = vmatprep.subr.bf16.mxu0 0
  %628 = vmatpush1.bf16.msra.mxu0 0
  %629 = vmatprep.subr.bf16.mxu0 0
  %630 = vmatpush1.bf16.msra.mxu0 0
  %631 = vmatprep.subr.bf16.mxu0 0
  %632 = vmatpush1.bf16.msra.mxu0 0
  %633 = vmatprep.subr.bf16.mxu0 0
  %634 = vmatpush1.bf16.msra.mxu0 0
  %635 = vmatprep.subr.bf16.mxu0 0
  %636 = vmatpush1.bf16.msra.mxu0 0
  %637 = vmatprep.subr.bf16.mxu0 0
  %638 = vmatpush1.bf16.msra.mxu0 0
  %639 = vmatprep.subr.bf16.mxu0 0
  %640 = vmatpush1.bf16.msra.mxu0 0
  %641 = vmatprep.mubr.bf16.mxu0 0
  %642 = vmatmul.mubr.bf16.gmra.mrb[0].mxu0 %v607
  %v643 = vpop.f32.mrb[0].mxu0
  %v644 = vadd.f32 %v592, %v643
  %v645 = vpop.f32.mrb[0].mxu0
  %v646 = vpop.f32.mrb[0].mxu0
  %v647 = vadd.f32 %v592, %v646
  %v648 = vpop.f32.mrb[0].mxu0
  %649 = vdwg.mxu0
  %v650 = vmul.f32 %v644, 0.5
  %v651 = vmul.f32 %v647, 0.5
  %v652 = vmul.f32 %v644, 0.70710677
  %v653 = vmul.f32 %v647, 0.70710677
  %vm654 = vcmp.lt.f32.partialorder %v652, 0.0
  %vm655 = vcmp.lt.f32.partialorder %v653, 0.0
  %v656 = vsel %vm654, -1.0, 1.0
  %v657 = vsel %vm655, -1.0, 1.0
  %v658 = vand.u32 2147483647, %v652
  %v659 = vand.u32 2147483647, %v653
  %v660 = vmul.f32 %v658, 0.3275911
  %v661 = vmul.f32 %v659, 0.3275911
  %v662 = vadd.f32 %v660, 1.0
  %v663 = vadd.f32 %v661, 1.0
  %v664 = vrcp.pop %v662
  %v665 = vmul.f32 1.0, %v664
  %v666 = vrcp.pop %v663
  %v667 = vmul.f32 1.0, %v666
  %v668 = vmul.f32 %v665, 1.0614054
  %v669 = vmul.f32 %v667, 1.0614054
  %v670 = vsub.f32 %v668, 1.4531521
  %v671 = vsub.f32 %v669, 1.4531521
  %v672 = vmul.f32 %v670, %v665
  %v673 = vmul.f32 %v671, %v667
  %v674 = vadd.f32 %v672, 1.4214138
  %v675 = vadd.f32 %v673, 1.4214138
  %v676 = vmul.f32 %v674, %v665
  %v677 = vmul.f32 %v675, %v667
  %v678 = vsub.f32 %v676, 0.28449672
  %v679 = vsub.f32 %v677, 0.28449672
  %v680 = vmul.f32 %v678, %v665
  %v681 = vmul.f32 %v679, %v667
  %v682 = vadd.f32 %v680, 0.2548296
  %v683 = vadd.f32 %v681, 0.2548296
  %v684 = vmul.f32 %v682, %v665
  %v685 = vmul.f32 %v683, %v667
  %v686 = vsub.f32 0.0, %v658
  %v687 = vsub.f32 0.0, %v659
  %v688 = vmul.f32 %v686, %v658
  %v689 = vmul.f32 %v687, %v659
  %v690 = vmul.f32 %v688, 1.442695
  %v691 = vpow.pop %v690
  %v692 = vmul.f32 %v689, 1.442695
  %v693 = vpow.pop %v692
  %v694 = vmul.f32 %v684, %v691
  %v695 = vmul.f32 %v685, %v693
  %v696 = vsub.f32 1.0, %v694
  %v697 = vsub.f32 1.0, %v695
  %v698 = vmul.f32 %v656, %v696
  %v699 = vmul.f32 %v657, %v697
  %v700 = vadd.f32 %v698, 1.0
  %v701 = vadd.f32 %v699, 1.0
  %v702 = vmul.f32 %v650, %v700
  %v703 = vmul.f32 %v651, %v701
  %v704 = vpack.c.bf16 %v703, %v702
  %v705 = vld [vmem:[%s10] sm:$0xf]
  %v706 = vld [vmem:[%s10 + $0x4] sm:$0xf]
  %v707 = vld [vmem:[%s10 + $0x8] sm:$0xf]
  %v708 = vld [vmem:[%s10 + $0xc] sm:$0xf]
  %v709 = vld [vmem:[%s10 + $0x10] sm:$0xf]
  %v710 = vld [vmem:[%s10 + $0x14] sm:$0xf]
  %v711 = vld [vmem:[%s10 + $0x18] sm:$0xf]
  %v712 = vld [vmem:[%s10 + $0x1c] sm:$0xf]
  %v713 = vld [vmem:[%s11] sm:$0x1]
  %v715 = vlaneseq
  %v716 = vshrl.u32 %v715, 7
  %v717 = vsub.s32 0, %v716
  %v718 = vrot.slane %v713, %v717
  %v728 = vunpack.c.l.b16 %v705
  %v729 = vunpack.c.l.b16 %v706
  %v730 = vunpack.c.l.b16 %v707
  %v731 = vunpack.c.l.b16 %v708
  %v732 = vunpack.c.l.b16 %v709
  %v733 = vunpack.c.l.b16 %v710
  %v734 = vunpack.c.l.b16 %v711
  %v735 = vunpack.c.l.b16 %v712
  %v736 = vpack.c.b16 %v729, %v728
  %v737 = vpack.c.b16 %v731, %v730
  %v738 = vpack.c.b16 %v733, %v732
  %v739 = vpack.c.b16 %v735, %v734
  %v745 = vsel %vm253, %v704, 0
  %747 = vmatprep.subr.bf16.mxu0 0
  %748 = vmatpush1.bf16.msra.mxu0 %v736
  %749 = vmatprep.subr.bf16.mxu0 0
  %750 = vmatpush1.bf16.msra.mxu0 %v737
  %751 = vmatprep.subr.bf16.mxu0 0
  %752 = vmatpush1.bf16.msra.mxu0 %v738
  %753 = vmatprep.subr.bf16.mxu0 0
  %754 = vmatpush1.bf16.msra.mxu0 %v739
  %755 = vmatprep.subr.bf16.mxu0 0
  %756 = vmatpush1.bf16.msra.mxu0 0
  %757 = vmatprep.subr.bf16.mxu0 0
  %758 = vmatpush1.bf16.msra.mxu0 0
  %759 = vmatprep.subr.bf16.mxu0 0
  %760 = vmatpush1.bf16.msra.mxu0 0
  %761 = vmatprep.subr.bf16.mxu0 0
  %762 = vmatpush1.bf16.msra.mxu0 0
  %763 = vmatprep.subr.bf16.mxu0 0
  %764 = vmatpush1.bf16.msra.mxu0 0
  %765 = vmatprep.subr.bf16.mxu0 0
  %766 = vmatpush1.bf16.msra.mxu0 0
  %767 = vmatprep.subr.bf16.mxu0 0
  %768 = vmatpush1.bf16.msra.mxu0 0
  %769 = vmatprep.subr.bf16.mxu0 0
  %770 = vmatpush1.bf16.msra.mxu0 0
  %771 = vmatprep.subr.bf16.mxu0 0
  %772 = vmatpush1.bf16.msra.mxu0 0
  %773 = vmatprep.subr.bf16.mxu0 0
  %774 = vmatpush1.bf16.msra.mxu0 0
  %775 = vmatprep.subr.bf16.mxu0 0
  %776 = vmatpush1.bf16.msra.mxu0 0
  %777 = vmatprep.subr.bf16.mxu0 0
  %778 = vmatpush1.bf16.msra.mxu0 0
  %779 = vmatprep.mubr.bf16.mxu0 0
  %780 = vmatmul.mubr.bf16.gmra.mrb[0].mxu0 %v745
  %v781 = vpop.f32.mrb[0].mxu0
  %v782 = vadd.f32 %v718, %v781
  %v783 = vpop.f32.mrb[0].mxu0
  %v784 = vpop.f32.mrb[0].mxu0
  %v785 = vadd.f32 %v718, %v784
  %v786 = vpop.f32.mrb[0].mxu0
  %787 = vdwg.mxu0
  %v788 = vadd.f32 %v782, %v580
  %v789 = vadd.f32 %v785, %v581
  %v790 = vld [vmem:[%s12] sm:$0x1]
  %v791 = vld [vmem:[%s13] sm:$0x1]
  %v792 = vsel %vm82, %v788, 0.0
  %793 = vadd.xlane.f32.xlu0 %v792
  %v794 = vpop.xlane.xlu0 %793
  %v795 = vsel %vm82, %v789, 0.0
  %796 = vadd.xlane.f32.xlu0 %v795
  %v797 = vpop.xlane.xlu0 %796
  %v798 = vmul.f32 %v794, %v545
  %v799 = vmul.f32 %v797, %v545
  %v800 = vsub.f32 %v788, %v798
  %v801 = vsub.f32 %v789, %v799
  %v802 = vmul.f32 %v800, %v800
  %v803 = vmul.f32 %v801, %v801
  %v804 = vsel %vm82, %v802, 0.0
  %805 = vadd.xlane.f32.xlu0 %v804
  %v806 = vpop.xlane.xlu0 %805
  %v807 = vsel %vm82, %v803, 0.0
  %808 = vadd.xlane.f32.xlu0 %v807
  %v809 = vpop.xlane.xlu0 %808
  %v810 = vmul.f32 %v806, %v545
  %v811 = vmul.f32 %v809, %v545
  %v812 = vadd.f32 %v810, 1e-05
  %v813 = vadd.f32 %v811, 1e-05
  %v814 = vrsqrt.pop %v812
  %v815 = vrsqrt.pop %v813
  %v816 = vmul.f32 %v800, %v814
  %v817 = vmul.f32 %v801, %v815
  %v819 = vlaneseq
  %v820 = vshrl.u32 %v819, 7
  %v821 = vsub.s32 0, %v820
  %v822 = vrot.slane %v790, %v821
  %v824 = vmul.f32 %v822, %v816
  %v825 = vmul.f32 %v822, %v817
  %v827 = vlaneseq
  %v828 = vshrl.u32 %v827, 7
  %v829 = vsub.s32 0, %v828
  %v830 = vrot.slane %v791, %v829
  %v832 = vadd.f32 %v824, %v830
  %v833 = vadd.f32 %v825, %v830
  %834 = vst.msk [vmem:[%s14] sm:$0xff] %vm82, %v832
  %835 = vst.msk [vmem:[%s14 + $0x8] sm:$0xff] %vm82, %v833
  %v836 = vpack.c.bf16 %v833, %v832
  %s837 = scalar_lea.vmem %s2, 16
  %v838 = vld [vmem:[%s837] sm:$0xf]
  %v839 = vld [vmem:[%s837 + $0x4] sm:$0xf]
  %v840 = vld [vmem:[%s837 + $0x8] sm:$0xf]
  %v841 = vld [vmem:[%s837 + $0xc] sm:$0xf]
  %s842 = scalar_lea.vmem %s3, 1
  %v843 = vld [vmem:[%s842] sm:$0x1]
  %v845 = vlaneseq
  %v846 = vshrl.u32 %v845, 7
  %v847 = vsub.s32 0, %v846
  %v848 = vrot.slane %v843, %v847
  %v854 = vunpack.c.l.b16 %v838
  %v855 = vunpack.c.l.b16 %v839
  %v856 = vunpack.c.l.b16 %v840
  %v857 = vunpack.c.l.b16 %v841
  %v858 = vpack.c.b16 %v855, %v854
  %v859 = vpack.c.b16 %v857, %v856
  %v863 = vsel %vm82, %v836, 0
  %865 = vmatprep.subr.bf16.mxu0 0
  %866 = vmatpush1.bf16.msra.mxu0 %v858
  %867 = vmatprep.subr.bf16.mxu0 0
  %868 = vmatpush1.bf16.msra.mxu0 %v859
  %869 = vmatprep.subr.bf16.mxu0 0
  %870 = vmatpush1.bf16.msra.mxu0 0
  %871 = vmatprep.subr.bf16.mxu0 0
  %872 = vmatpush1.bf16.msra.mxu0 0
  %873 = vmatprep.subr.bf16.mxu0 0
  %874 = vmatpush1.bf16.msra.mxu0 0
  %875 = vmatprep.subr.bf16.mxu0 0
  %876 = vmatpush1.bf16.msra.mxu0 0
  %877 = vmatprep.subr.bf16.mxu0 0
  %878 = vmatpush1.bf16.msra.mxu0 0
  %879 = vmatprep.subr.bf16.mxu0 0
  %880 = vmatpush1.bf16.msra.mxu0 0
  %881 = vmatprep.subr.bf16.mxu0 0
  %882 = vmatpush1.bf16.msra.mxu0 0
  %883 = vmatprep.subr.bf16.mxu0 0
  %884 = vmatpush1.bf16.msra.mxu0 0
  %885 = vmatprep.subr.bf16.mxu0 0
  %886 = vmatpush1.bf16.msra.mxu0 0
  %887 = vmatprep.subr.bf16.mxu0 0
  %888 = vmatpush1.bf16.msra.mxu0 0
  %889 = vmatprep.subr.bf16.mxu0 0
  %890 = vmatpush1.bf16.msra.mxu0 0
  %891 = vmatprep.subr.bf16.mxu0 0
  %892 = vmatpush1.bf16.msra.mxu0 0
  %893 = vmatprep.subr.bf16.mxu0 0
  %894 = vmatpush1.bf16.msra.mxu0 0
  %895 = vmatprep.subr.bf16.mxu0 0
  %896 = vmatpush1.bf16.msra.mxu0 0
  %897 = vmatprep.mubr.bf16.mxu0 0
  %898 = vmatmul.mubr.bf16.gmra.mrb[0].mxu0 %v863
  %v899 = vpop.f32.mrb[0].mxu0
  %v900 = vadd.f32 %v848, %v899
  %v901 = vpop.f32.mrb[0].mxu0
  %v902 = vpop.f32.mrb[0].mxu0
  %v903 = vadd.f32 %v848, %v902
  %v904 = vpop.f32.mrb[0].mxu0
  %905 = vdwg.mxu0
  %908 = vrot.lane.b32.xlu0 %v900, 120
  %v909 = vpop.permute.xlu0 %908
  %910 = vrot.lane.b32.xlu0 %v903, 120
  %v911 = vpop.permute.xlu0 %910
  %914 = vrot.lane.b32.xlu0 %v900, 112
  %v915 = vpop.permute.xlu0 %914
  %916 = vrot.lane.b32.xlu0 %v903, 112
  %v917 = vpop.permute.xlu0 %916
  %920 = vrot.lane.b32.xlu0 %v900, 104
  %v921 = vpop.permute.xlu0 %920
  %922 = vrot.lane.b32.xlu0 %v903, 104
  %v923 = vpop.permute.xlu0 %922
  %v926 = vpack.c.bf16 %v903, %v900
  %v927 = vpack.c.bf16 %v911, %v909
  %v928 = vpack.c.bf16 %v917, %v915
  %v929 = vpack.c.bf16 %v923, %v921
  %934 = vrot.lane.b32.xlu0 %v926, 96
  %v935 = vpop.permute.xlu0 %934
  %936 = vrot.lane.b32.xlu0 %v927, 96
  %v937 = vpop.permute.xlu0 %936
  %938 = vrot.lane.b32.xlu0 %v928, 96
  %v939 = vpop.permute.xlu0 %938
  %940 = vrot.lane.b32.xlu0 %v929, 96
  %v941 = vpop.permute.xlu0 %940
  %v943 = vsel %vm163, %v926, 0
  %v946 = vsel %vm163, %v927, 0
  %v949 = vsel %vm163, %v928, 0
  %v952 = vsel %vm163, %v929, 0
  %v955 = vsel %vm163, %v935, 0
  %v958 = vsel %vm163, %v937, 0
  %v961 = vsel %vm163, %v939, 0
  %v964 = vsel %vm163, %v941, 0
  %966 = vmatprep.subr.bf16.mxu0 0
  %967 = vmatpush1.bf16.xpose.msra.mxu0 %v955
  %968 = vmatprep.subr.bf16.mxu0 0
  %969 = vmatpush1.bf16.xpose.msra.mxu0 %v958
  %970 = vmatprep.subr.bf16.mxu0 0
  %971 = vmatpush1.bf16.xpose.msra.mxu0 %v961
  %972 = vmatprep.subr.bf16.mxu0 0
  %973 = vmatpush1.bf16.xpose.msra.mxu0 %v964
  %974 = vmatprep.subr.bf16.mxu0 0
  %975 = vmatpush1.bf16.xpose.msra.mxu0 0
  %976 = vmatprep.subr.bf16.mxu0 0
  %977 = vmatpush1.bf16.xpose.msra.mxu0 0
  %978 = vmatprep.subr.bf16.mxu0 0
  %979 = vmatpush1.bf16.xpose.msra.mxu0 0
  %980 = vmatprep.subr.bf16.mxu0 0
  %981 = vmatpush1.bf16.xpose.msra.mxu0 0
  %982 = vmatprep.subr.bf16.mxu0 0
  %983 = vmatpush1.bf16.xpose.msra.mxu0 0
  %984 = vmatprep.subr.bf16.mxu0 0
  %985 = vmatpush1.bf16.xpose.msra.mxu0 0
  %986 = vmatprep.subr.bf16.mxu0 0
  %987 = vmatpush1.bf16.xpose.msra.mxu0 0
  %988 = vmatprep.subr.bf16.mxu0 0
  %989 = vmatpush1.bf16.xpose.msra.mxu0 0
  %990 = vmatprep.subr.bf16.mxu0 0
  %991 = vmatpush1.bf16.xpose.msra.mxu0 0
  %992 = vmatprep.subr.bf16.mxu0 0
  %993 = vmatpush1.bf16.xpose.msra.mxu0 0
  %994 = vmatprep.subr.bf16.mxu0 0
  %995 = vmatpush1.bf16.xpose.msra.mxu0 0
  %996 = vmatprep.subr.bf16.mxu0 0
  %997 = vmatpush1.bf16.xpose.msra.mxu0 0
  %998 = vmatprep.mubr.bf16.mxu0 0
  %999 = vmatmul.mubr.bf16.gmra.mrb[0].mxu0 %v943
  %v1000 = vpop.f32.mrb[0].mxu0
  %v1001 = vadd.f32 %v50, %v1000
  %v1002 = vpop.f32.mrb[0].mxu0
  %v1003 = vpop.f32.mrb[0].mxu0
  %v1004 = vadd.f32 %v51, %v1003
  %v1005 = vpop.f32.mrb[0].mxu0
  %1006 = vmatprep.mubr.bf16.mxu0 0
  %1007 = vmatmul.mubr.bf16.gmra.mrb[0].mxu0 %v946
  %v1008 = vpop.f32.mrb[0].mxu0
  %v1009 = vadd.f32 %v52, %v1008
  %v1010 = vpop.f32.mrb[0].mxu0
  %v1011 = vpop.f32.mrb[0].mxu0
  %v1012 = vadd.f32 %v53, %v1011
  %v1013 = vpop.f32.mrb[0].mxu0
  %1014 = vmatprep.mubr.bf16.mxu0 0
  %1015 = vmatmul.mubr.bf16.gmra.mrb[0].mxu0 %v949
  %v1016 = vpop.f32.mrb[0].mxu0
  %v1017 = vadd.f32 %v54, %v1016
  %v1018 = vpop.f32.mrb[0].mxu0
  %v1019 = vpop.f32.mrb[0].mxu0
  %v1020 = vadd.f32 %v55, %v1019
  %v1021 = vpop.f32.mrb[0].mxu0
  %1022 = vmatprep.mubr.bf16.mxu0 0
  %1023 = vmatmul.mubr.bf16.gmra.mrb[0].mxu0 %v952
  %v1024 = vpop.f32.mrb[0].mxu0
  %v1025 = vadd.f32 %v56, %v1024
  %v1026 = vpop.f32.mrb[0].mxu0
  %v1027 = vpop.f32.mrb[0].mxu0
  %v1028 = vadd.f32 %v57, %v1027
  %v1029 = vpop.f32.mrb[0].mxu0
  %1030 = vdwg.mxu0
  %v1031 = vsel %vm253, %v1001, -inf
  %1032 = vmax.xlane.f32.xlu0 %v1031
  %v1033 = vpop.xlane.xlu0 %1032
  %v1034 = vsel %vm253, %v1004, -inf
  %1035 = vmax.xlane.f32.xlu0 %v1034
  %v1036 = vpop.xlane.xlu0 %1035
  %v1037 = vsel %vm253, %v1009, -inf
  %1038 = vmax.xlane.f32.xlu0 %v1037
  %v1039 = vpop.xlane.xlu0 %1038
  %v1040 = vsel %vm253, %v1012, -inf
  %1041 = vmax.xlane.f32.xlu0 %v1040
  %v1042 = vpop.xlane.xlu0 %1041
  %v1043 = vsel %vm253, %v1017, -inf
  %1044 = vmax.xlane.f32.xlu0 %v1043
  %v1045 = vpop.xlane.xlu0 %1044
  %v1046 = vsel %vm253, %v1020, -inf
  %1047 = vmax.xlane.f32.xlu0 %v1046
  %v1048 = vpop.xlane.xlu0 %1047
  %v1049 = vsel %vm253, %v1025, -inf
  %1050 = vmax.xlane.f32.xlu0 %v1049
  %v1051 = vpop.xlane.xlu0 %1050
  %v1052 = vsel %vm253, %v1028, -inf
  %1053 = vmax.xlane.f32.xlu0 %v1052
  %v1054 = vpop.xlane.xlu0 %1053
  %v1055 = vsub.f32 %v1001, %v1033
  %v1056 = vsub.f32 %v1004, %v1036
  %v1057 = vsub.f32 %v1009, %v1039
  %v1058 = vsub.f32 %v1012, %v1042
  %v1059 = vsub.f32 %v1017, %v1045
  %v1060 = vsub.f32 %v1020, %v1048
  %v1061 = vsub.f32 %v1025, %v1051
  %v1062 = vsub.f32 %v1028, %v1054
  %v1063 = vmul.f32 %v1055, 1.442695
  %v1064 = vpow.pop %v1063
  %v1065 = vmul.f32 %v1056, 1.442695
  %v1066 = vpow.pop %v1065
  %v1067 = vmul.f32 %v1057, 1.442695
  %v1068 = vpow.pop %v1067
  %v1069 = vmul.f32 %v1058, 1.442695
  %v1070 = vpow.pop %v1069
  %v1071 = vmul.f32 %v1059, 1.442695
  %v1072 = vpow.pop %v1071
  %v1073 = vmul.f32 %v1060, 1.442695
  %v1074 = vpow.pop %v1073
  %v1075 = vmul.f32 %v1061, 1.442695
  %v1076 = vpow.pop %v1075
  %v1077 = vmul.f32 %v1062, 1.442695
  %v1078 = vpow.pop %v1077
  %v1079 = vsel %vm253, %v1064, 0.0
  %1080 = vadd.xlane.f32.xlu0 %v1079
  %v1081 = vpop.xlane.xlu0 %1080
  %v1082 = vsel %vm253, %v1066, 0.0
  %1083 = vadd.xlane.f32.xlu0 %v1082
  %v1084 = vpop.xlane.xlu0 %1083
  %v1085 = vsel %vm253, %v1068, 0.0
  %1086 = vadd.xlane.f32.xlu0 %v1085
  %v1087 = vpop.xlane.xlu0 %1086
  %v1088 = vsel %vm253, %v1070, 0.0
  %1089 = vadd.xlane.f32.xlu0 %v1088
  %v1090 = vpop.xlane.xlu0 %1089
  %v1091 = vsel %vm253, %v1072, 0.0
  %1092 = vadd.xlane.f32.xlu0 %v1091
  %v1093 = vpop.xlane.xlu0 %1092
  %v1094 = vsel %vm253, %v1074, 0.0
  %1095 = vadd.xlane.f32.xlu0 %v1094
  %v1096 = vpop.xlane.xlu0 %1095
  %v1097 = vsel %vm253, %v1076, 0.0
  %1098 = vadd.xlane.f32.xlu0 %v1097
  %v1099 = vpop.xlane.xlu0 %1098
  %v1100 = vsel %vm253, %v1078, 0.0
  %1101 = vadd.xlane.f32.xlu0 %v1100
  %v1102 = vpop.xlane.xlu0 %1101
  %v1103 = vpack.c.bf16 %v1066, %v1064
  %v1104 = vpack.c.bf16 %v1070, %v1068
  %v1105 = vpack.c.bf16 %v1074, %v1072
  %v1106 = vpack.c.bf16 %v1078, %v1076
  %1107 = vrot.lane.b32.xlu0 %v926, 64
  %v1108 = vpop.permute.xlu0 %1107
  %1109 = vrot.lane.b32.xlu0 %v927, 64
  %v1110 = vpop.permute.xlu0 %1109
  %1111 = vrot.lane.b32.xlu0 %v928, 64
  %v1112 = vpop.permute.xlu0 %1111
  %1113 = vrot.lane.b32.xlu0 %v929, 64
  %v1114 = vpop.permute.xlu0 %1113
  %v1120 = vsel %vm253, %v1103, 0
  %v1123 = vsel %vm253, %v1104, 0
  %v1126 = vsel %vm253, %v1105, 0
  %v1129 = vsel %vm253, %v1106, 0
  %1131 = vmatprep.subr.bf16.mxu0 0
  %1132 = vmatpush1.bf16.msra.mxu0 %v1108
  %1133 = vmatprep.subr.bf16.mxu0 0
  %1134 = vmatpush1.bf16.msra.mxu0 %v1110
  %1135 = vmatprep.subr.bf16.mxu0 0
  %1136 = vmatpush1.bf16.msra.mxu0 %v1112
  %1137 = vmatprep.subr.bf16.mxu0 0
  %1138 = vmatpush1.bf16.msra.mxu0 %v1114
  %1139 = vmatprep.subr.bf16.mxu0 0
  %1140 = vmatpush1.bf16.msra.mxu0 0
  %1141 = vmatprep.subr.bf16.mxu0 0
  %1142 = vmatpush1.bf16.msra.mxu0 0
  %1143 = vmatprep.subr.bf16.mxu0 0
  %1144 = vmatpush1.bf16.msra.mxu0 0
  %1145 = vmatprep.subr.bf16.mxu0 0
  %1146 = vmatpush1.bf16.msra.mxu0 0
  %1147 = vmatprep.subr.bf16.mxu0 0
  %1148 = vmatpush1.bf16.msra.mxu0 0
  %1149 = vmatprep.subr.bf16.mxu0 0
  %1150 = vmatpush1.bf16.msra.mxu0 0
  %1151 = vmatprep.subr.bf16.mxu0 0
  %1152 = vmatpush1.bf16.msra.mxu0 0
  %1153 = vmatprep.subr.bf16.mxu0 0
  %1154 = vmatpush1.bf16.msra.mxu0 0
  %1155 = vmatprep.subr.bf16.mxu0 0
  %1156 = vmatpush1.bf16.msra.mxu0 0
  %1157 = vmatprep.subr.bf16.mxu0 0
  %1158 = vmatpush1.bf16.msra.mxu0 0
  %1159 = vmatprep.subr.bf16.mxu0 0
  %1160 = vmatpush1.bf16.msra.mxu0 0
  %1161 = vmatprep.subr.bf16.mxu0 0
  %1162 = vmatpush1.bf16.msra.mxu0 0
  %1163 = vmatprep.mubr.bf16.mxu0 0
  %1164 = vmatmul.mubr.bf16.gmra.mrb[0].mxu0 %v1120
  %v1165 = vpop.f32.mrb[0].mxu0
  %v1166 = vadd.f32 0.0, %v1165
  %v1167 = vpop.f32.mrb[0].mxu0
  %v1168 = vpop.f32.mrb[0].mxu0
  %v1169 = vadd.f32 0.0, %v1168
  %v1170 = vpop.f32.mrb[0].mxu0
  %1171 = vmatprep.mubr.bf16.mxu0 0
  %1172 = vmatmul.mubr.bf16.gmra.mrb[0].mxu0 %v1123
  %v1173 = vpop.f32.mrb[0].mxu0
  %v1174 = vadd.f32 0.0, %v1173
  %v1175 = vpop.f32.mrb[0].mxu0
  %v1176 = vpop.f32.mrb[0].mxu0
  %v1177 = vadd.f32 0.0, %v1176
  %v1178 = vpop.f32.mrb[0].mxu0
  %1179 = vmatprep.mubr.bf16.mxu0 0
  %1180 = vmatmul.mubr.bf16.gmra.mrb[0].mxu0 %v1126
  %v1181 = vpop.f32.mrb[0].mxu0
  %v1182 = vadd.f32 0.0, %v1181
  %v1183 = vpop.f32.mrb[0].mxu0
  %v1184 = vpop.f32.mrb[0].mxu0
  %v1185 = vadd.f32 0.0, %v1184
  %v1186 = vpop.f32.mrb[0].mxu0
  %1187 = vmatprep.mubr.bf16.mxu0 0
  %1188 = vmatmul.mubr.bf16.gmra.mrb[0].mxu0 %v1129
  %v1189 = vpop.f32.mrb[0].mxu0
  %v1190 = vadd.f32 0.0, %v1189
  %v1191 = vpop.f32.mrb[0].mxu0
  %v1192 = vpop.f32.mrb[0].mxu0
  %v1193 = vadd.f32 0.0, %v1192
  %v1194 = vpop.f32.mrb[0].mxu0
  %1195 = vdwg.mxu0
  %v1196 = vrcp.pop %v1081
  %v1197 = vrcp.pop %v1084
  %v1198 = vrcp.pop %v1087
  %v1199 = vrcp.pop %v1090
  %v1200 = vrcp.pop %v1093
  %v1201 = vrcp.pop %v1096
  %v1202 = vrcp.pop %v1099
  %v1203 = vrcp.pop %v1102
  %v1204 = vmul.f32 %v1166, %v1196
  %v1205 = vmul.f32 %v1169, %v1197
  %v1206 = vmul.f32 %v1174, %v1198
  %v1207 = vmul.f32 %v1177, %v1199
  %v1208 = vmul.f32 %v1182, %v1200
  %v1209 = vmul.f32 %v1185, %v1201
  %v1210 = vmul.f32 %v1190, %v1202
  %v1211 = vmul.f32 %v1193, %v1203
  %1214 = vrot.lane.b32.xlu0 %v1206, 8
  %v1215 = vpop.permute.xlu0 %1214
  %1216 = vrot.lane.b32.xlu0 %v1207, 8
  %v1217 = vpop.permute.xlu0 %1216
  %1222 = vrot.lane.b32.xlu0 %v1208, 16
  %v1223 = vpop.permute.xlu0 %1222
  %1224 = vrot.lane.b32.xlu0 %v1209, 16
  %v1225 = vpop.permute.xlu0 %1224
  %1230 = vrot.lane.b32.xlu0 %v1210, 24
  %v1231 = vpop.permute.xlu0 %1230
  %1232 = vrot.lane.b32.xlu0 %v1211, 24
  %v1233 = vpop.permute.xlu0 %1232
  %v1236 = vsel %vm163, %v1204, %v1215
  %v1237 = vsel %vm163, %v1205, %v1217
  %v1238 = vsel %vm461, %v1236, %v1223
  %v1239 = vsel %vm461, %v1237, %v1225
  %v1240 = vsel %vm464, %v1238, %v1231
  %v1241 = vsel %vm464, %v1239, %v1233
  %v1242 = vpack.c.bf16 %v1241, %v1240
  %s1243 = scalar_lea.vmem %s4, 16
  %v1244 = vld [vmem:[%s1243] sm:$0xf]
  %v1245 = vld [vmem:[%s1243 + $0x4] sm:$0xf]
  %v1246 = vld [vmem:[%s1243 + $0x8] sm:$0xf]
  %v1247 = vld [vmem:[%s1243 + $0xc] sm:$0xf]
  %s1248 = scalar_lea.vmem %s5, 1
  %v1249 = vld [vmem:[%s1248] sm:$0x1]
  %v1251 = vlaneseq
  %v1252 = vshrl.u32 %v1251, 7
  %v1253 = vsub.s32 0, %v1252
  %v1254 = vrot.slane %v1249, %v1253
  %v1260 = vunpack.c.l.b16 %v1244
  %v1261 = vunpack.c.l.b16 %v1245
  %v1262 = vunpack.c.l.b16 %v1246
  %v1263 = vunpack.c.l.b16 %v1247
  %v1264 = vpack.c.b16 %v1261, %v1260
  %v1265 = vpack.c.b16 %v1263, %v1262
  %v1269 = vsel %vm82, %v1242, 0
  %1271 = vmatprep.subr.bf16.mxu0 0
  %1272 = vmatpush1.bf16.msra.mxu0 %v1264
  %1273 = vmatprep.subr.bf16.mxu0 0
  %1274 = vmatpush1.bf16.msra.mxu0 %v1265
  %1275 = vmatprep.subr.bf16.mxu0 0
  %1276 = vmatpush1.bf16.msra.mxu0 0
  %1277 = vmatprep.subr.bf16.mxu0 0
  %1278 = vmatpush1.bf16.msra.mxu0 0
  %1279 = vmatprep.subr.bf16.mxu0 0
  %1280 = vmatpush1.bf16.msra.mxu0 0
  %1281 = vmatprep.subr.bf16.mxu0 0
  %1282 = vmatpush1.bf16.msra.mxu0 0
  %1283 = vmatprep.subr.bf16.mxu0 0
  %1284 = vmatpush1.bf16.msra.mxu0 0
  %1285 = vmatprep.subr.bf16.mxu0 0
  %1286 = vmatpush1.bf16.msra.mxu0 0
  %1287 = vmatprep.subr.bf16.mxu0 0
  %1288 = vmatpush1.bf16.msra.mxu0 0
  %1289 = vmatprep.subr.bf16.mxu0 0
  %1290 = vmatpush1.bf16.msra.mxu0 0
  %1291 = vmatprep.subr.bf16.mxu0 0
  %1292 = vmatpush1.bf16.msra.mxu0 0
  %1293 = vmatprep.subr.bf16.mxu0 0
  %1294 = vmatpush1.bf16.msra.mxu0 0
  %1295 = vmatprep.subr.bf16.mxu0 0
  %1296 = vmatpush1.bf16.msra.mxu0 0
  %1297 = vmatprep.subr.bf16.mxu0 0
  %1298 = vmatpush1.bf16.msra.mxu0 0
  %1299 = vmatprep.subr.bf16.mxu0 0
  %1300 = vmatpush1.bf16.msra.mxu0 0
  %1301 = vmatprep.subr.bf16.mxu0 0
  %1302 = vmatpush1.bf16.msra.mxu0 0
  %1303 = vmatprep.mubr.bf16.mxu0 0
  %1304 = vmatmul.mubr.bf16.gmra.mrb[0].mxu0 %v1269
  %v1305 = vpop.f32.mrb[0].mxu0
  %v1306 = vadd.f32 %v1254, %v1305
  %v1307 = vpop.f32.mrb[0].mxu0
  %v1308 = vpop.f32.mrb[0].mxu0
  %v1309 = vadd.f32 %v1254, %v1308
  %v1310 = vpop.f32.mrb[0].mxu0
  %1311 = vdwg.mxu0
  %v1312 = vadd.f32 %v1306, %v832
  %v1313 = vadd.f32 %v1309, %v833
  %s1314 = scalar_lea.vmem %s6, 1
  %v1315 = vld [vmem:[%s1314] sm:$0x1]
  %s1316 = scalar_lea.vmem %s7, 1
  %v1317 = vld [vmem:[%s1316] sm:$0x1]
  %v1318 = vsel %vm82, %v1312, 0.0
  %1319 = vadd.xlane.f32.xlu0 %v1318
  %v1320 = vpop.xlane.xlu0 %1319
  %v1321 = vsel %vm82, %v1313, 0.0
  %1322 = vadd.xlane.f32.xlu0 %v1321
  %v1323 = vpop.xlane.xlu0 %1322
  %v1324 = vmul.f32 %v1320, %v545
  %v1325 = vmul.f32 %v1323, %v545
  %v1326 = vsub.f32 %v1312, %v1324
  %v1327 = vsub.f32 %v1313, %v1325
  %v1328 = vmul.f32 %v1326, %v1326
  %v1329 = vmul.f32 %v1327, %v1327
  %v1330 = vsel %vm82, %v1328, 0.0
  %1331 = vadd.xlane.f32.xlu0 %v1330
  %v1332 = vpop.xlane.xlu0 %1331
  %v1333 = vsel %vm82, %v1329, 0.0
  %1334 = vadd.xlane.f32.xlu0 %v1333
  %v1335 = vpop.xlane.xlu0 %1334
  %v1336 = vmul.f32 %v1332, %v545
  %v1337 = vmul.f32 %v1335, %v545
  %v1338 = vadd.f32 %v1336, 1e-05
  %v1339 = vadd.f32 %v1337, 1e-05
  %v1340 = vrsqrt.pop %v1338
  %v1341 = vrsqrt.pop %v1339
  %v1342 = vmul.f32 %v1326, %v1340
  %v1343 = vmul.f32 %v1327, %v1341
  %v1345 = vlaneseq
  %v1346 = vshrl.u32 %v1345, 7
  %v1347 = vsub.s32 0, %v1346
  %v1348 = vrot.slane %v1315, %v1347
  %v1350 = vmul.f32 %v1348, %v1342
  %v1351 = vmul.f32 %v1348, %v1343
  %v1353 = vlaneseq
  %v1354 = vshrl.u32 %v1353, 7
  %v1355 = vsub.s32 0, %v1354
  %v1356 = vrot.slane %v1317, %v1355
  %v1358 = vadd.f32 %v1350, %v1356
  %v1359 = vadd.f32 %v1351, %v1356
  %v1360 = vpack.c.bf16 %v1359, %v1358
  %s1361 = scalar_lea.vmem %s8, 16
  %v1362 = vld [vmem:[%s1361] sm:$0xf]
  %v1363 = vld [vmem:[%s1361 + $0x4] sm:$0xf]
  %v1364 = vld [vmem:[%s1361 + $0x8] sm:$0xf]
  %v1365 = vld [vmem:[%s1361 + $0xc] sm:$0xf]
  %s1366 = scalar_lea.vmem %s9, 1
  %v1367 = vld [vmem:[%s1366] sm:$0x1]
  %v1369 = vlaneseq
  %v1370 = vshrl.u32 %v1369, 7
  %v1371 = vsub.s32 0, %v1370
  %v1372 = vrot.slane %v1367, %v1371
  %v1378 = vunpack.c.l.b16 %v1362
  %v1379 = vunpack.c.l.b16 %v1363
  %v1380 = vunpack.c.l.b16 %v1364
  %v1381 = vunpack.c.l.b16 %v1365
  %v1382 = vpack.c.b16 %v1379, %v1378
  %v1383 = vpack.c.b16 %v1381, %v1380
  %v1387 = vsel %vm82, %v1360, 0
  %1389 = vmatprep.subr.bf16.mxu0 0
  %1390 = vmatpush1.bf16.msra.mxu0 %v1382
  %1391 = vmatprep.subr.bf16.mxu0 0
  %1392 = vmatpush1.bf16.msra.mxu0 %v1383
  %1393 = vmatprep.subr.bf16.mxu0 0
  %1394 = vmatpush1.bf16.msra.mxu0 0
  %1395 = vmatprep.subr.bf16.mxu0 0
  %1396 = vmatpush1.bf16.msra.mxu0 0
  %1397 = vmatprep.subr.bf16.mxu0 0
  %1398 = vmatpush1.bf16.msra.mxu0 0
  %1399 = vmatprep.subr.bf16.mxu0 0
  %1400 = vmatpush1.bf16.msra.mxu0 0
  %1401 = vmatprep.subr.bf16.mxu0 0
  %1402 = vmatpush1.bf16.msra.mxu0 0
  %1403 = vmatprep.subr.bf16.mxu0 0
  %1404 = vmatpush1.bf16.msra.mxu0 0
  %1405 = vmatprep.subr.bf16.mxu0 0
  %1406 = vmatpush1.bf16.msra.mxu0 0
  %1407 = vmatprep.subr.bf16.mxu0 0
  %1408 = vmatpush1.bf16.msra.mxu0 0
  %1409 = vmatprep.subr.bf16.mxu0 0
  %1410 = vmatpush1.bf16.msra.mxu0 0
  %1411 = vmatprep.subr.bf16.mxu0 0
  %1412 = vmatpush1.bf16.msra.mxu0 0
  %1413 = vmatprep.subr.bf16.mxu0 0
  %1414 = vmatpush1.bf16.msra.mxu0 0
  %1415 = vmatprep.subr.bf16.mxu0 0
  %1416 = vmatpush1.bf16.msra.mxu0 0
  %1417 = vmatprep.subr.bf16.mxu0 0
  %1418 = vmatpush1.bf16.msra.mxu0 0
  %1419 = vmatprep.subr.bf16.mxu0 0
  %1420 = vmatpush1.bf16.msra.mxu0 0
  %1421 = vmatprep.mubr.bf16.mxu0 0
  %1422 = vmatmul.mubr.bf16.gmra.mrb[0].mxu0 %v1387
  %v1423 = vpop.f32.mrb[0].mxu0
  %v1424 = vadd.f32 %v1372, %v1423
  %v1425 = vpop.f32.mrb[0].mxu0
  %v1426 = vpop.f32.mrb[0].mxu0
  %v1427 = vadd.f32 %v1372, %v1426
  %v1428 = vpop.f32.mrb[0].mxu0
  %1429 = vdwg.mxu0
  %v1430 = vmul.f32 %v1424, 0.5
  %v1431 = vmul.f32 %v1427, 0.5
  %v1432 = vmul.f32 %v1424, 0.70710677
  %v1433 = vmul.f32 %v1427, 0.70710677
  %vm1434 = vcmp.lt.f32.partialorder %v1432, 0.0
  %vm1435 = vcmp.lt.f32.partialorder %v1433, 0.0
  %v1436 = vsel %vm1434, -1.0, 1.0
  %v1437 = vsel %vm1435, -1.0, 1.0
  %v1438 = vand.u32 2147483647, %v1432
  %v1439 = vand.u32 2147483647, %v1433
  %v1440 = vmul.f32 %v1438, 0.3275911
  %v1441 = vmul.f32 %v1439, 0.3275911
  %v1442 = vadd.f32 %v1440, 1.0
  %v1443 = vadd.f32 %v1441, 1.0
  %v1444 = vrcp.pop %v1442
  %v1445 = vmul.f32 1.0, %v1444
  %v1446 = vrcp.pop %v1443
  %v1447 = vmul.f32 1.0, %v1446
  %v1448 = vmul.f32 %v1445, 1.0614054
  %v1449 = vmul.f32 %v1447, 1.0614054
  %v1450 = vsub.f32 %v1448, 1.4531521
  %v1451 = vsub.f32 %v1449, 1.4531521
  %v1452 = vmul.f32 %v1450, %v1445
  %v1453 = vmul.f32 %v1451, %v1447
  %v1454 = vadd.f32 %v1452, 1.4214138
  %v1455 = vadd.f32 %v1453, 1.4214138
  %v1456 = vmul.f32 %v1454, %v1445
  %v1457 = vmul.f32 %v1455, %v1447
  %v1458 = vsub.f32 %v1456, 0.28449672
  %v1459 = vsub.f32 %v1457, 0.28449672
  %v1460 = vmul.f32 %v1458, %v1445
  %v1461 = vmul.f32 %v1459, %v1447
  %v1462 = vadd.f32 %v1460, 0.2548296
  %v1463 = vadd.f32 %v1461, 0.2548296
  %v1464 = vmul.f32 %v1462, %v1445
  %v1465 = vmul.f32 %v1463, %v1447
  %v1466 = vsub.f32 0.0, %v1438
  %v1467 = vsub.f32 0.0, %v1439
  %v1468 = vmul.f32 %v1466, %v1438
  %v1469 = vmul.f32 %v1467, %v1439
  %v1470 = vmul.f32 %v1468, 1.442695
  %v1471 = vpow.pop %v1470
  %v1472 = vmul.f32 %v1469, 1.442695
  %v1473 = vpow.pop %v1472
  %v1474 = vmul.f32 %v1464, %v1471
  %v1475 = vmul.f32 %v1465, %v1473
  %v1476 = vsub.f32 1.0, %v1474
  %v1477 = vsub.f32 1.0, %v1475
  %v1478 = vmul.f32 %v1436, %v1476
  %v1479 = vmul.f32 %v1437, %v1477
  %v1480 = vadd.f32 %v1478, 1.0
  %v1481 = vadd.f32 %v1479, 1.0
  %v1482 = vmul.f32 %v1430, %v1480
  %v1483 = vmul.f32 %v1431, %v1481
  %v1484 = vpack.c.bf16 %v1483, %v1482
  %s1485 = scalar_lea.vmem %s10, 32
  %v1486 = vld [vmem:[%s1485] sm:$0xf]
  %v1487 = vld [vmem:[%s1485 + $0x4] sm:$0xf]
  %v1488 = vld [vmem:[%s1485 + $0x8] sm:$0xf]
  %v1489 = vld [vmem:[%s1485 + $0xc] sm:$0xf]
  %v1490 = vld [vmem:[%s1485 + $0x10] sm:$0xf]
  %v1491 = vld [vmem:[%s1485 + $0x14] sm:$0xf]
  %v1492 = vld [vmem:[%s1485 + $0x18] sm:$0xf]
  %v1493 = vld [vmem:[%s1485 + $0x1c] sm:$0xf]
  %s1494 = scalar_lea.vmem %s11, 1
  %v1495 = vld [vmem:[%s1494] sm:$0x1]
  %v1497 = vlaneseq
  %v1498 = vshrl.u32 %v1497, 7
  %v1499 = vsub.s32 0, %v1498
  %v1500 = vrot.slane %v1495, %v1499
  %v1510 = vunpack.c.l.b16 %v1486
  %v1511 = vunpack.c.l.b16 %v1487
  %v1512 = vunpack.c.l.b16 %v1488
  %v1513 = vunpack.c.l.b16 %v1489
  %v1514 = vunpack.c.l.b16 %v1490
  %v1515 = vunpack.c.l.b16 %v1491
  %v1516 = vunpack.c.l.b16 %v1492
  %v1517 = vunpack.c.l.b16 %v1493
  %v1518 = vpack.c.b16 %v1511, %v1510
  %v1519 = vpack.c.b16 %v1513, %v1512
  %v1520 = vpack.c.b16 %v1515, %v1514
  %v1521 = vpack.c.b16 %v1517, %v1516
  %v1527 = vsel %vm253, %v1484, 0
  %1529 = vmatprep.subr.bf16.mxu0 0
  %1530 = vmatpush1.bf16.msra.mxu0 %v1518
  %1531 = vmatprep.subr.bf16.mxu0 0
  %1532 = vmatpush1.bf16.msra.mxu0 %v1519
  %1533 = vmatprep.subr.bf16.mxu0 0
  %1534 = vmatpush1.bf16.msra.mxu0 %v1520
  %1535 = vmatprep.subr.bf16.mxu0 0
  %1536 = vmatpush1.bf16.msra.mxu0 %v1521
  %1537 = vmatprep.subr.bf16.mxu0 0
  %1538 = vmatpush1.bf16.msra.mxu0 0
  %1539 = vmatprep.subr.bf16.mxu0 0
  %1540 = vmatpush1.bf16.msra.mxu0 0
  %1541 = vmatprep.subr.bf16.mxu0 0
  %1542 = vmatpush1.bf16.msra.mxu0 0
  %1543 = vmatprep.subr.bf16.mxu0 0
  %1544 = vmatpush1.bf16.msra.mxu0 0
  %1545 = vmatprep.subr.bf16.mxu0 0
  %1546 = vmatpush1.bf16.msra.mxu0 0
  %1547 = vmatprep.subr.bf16.mxu0 0
  %1548 = vmatpush1.bf16.msra.mxu0 0
  %1549 = vmatprep.subr.bf16.mxu0 0
  %1550 = vmatpush1.bf16.msra.mxu0 0
  %1551 = vmatprep.subr.bf16.mxu0 0
  %1552 = vmatpush1.bf16.msra.mxu0 0
  %1553 = vmatprep.subr.bf16.mxu0 0
  %1554 = vmatpush1.bf16.msra.mxu0 0
  %1555 = vmatprep.subr.bf16.mxu0 0
  %1556 = vmatpush1.bf16.msra.mxu0 0
  %1557 = vmatprep.subr.bf16.mxu0 0
  %1558 = vmatpush1.bf16.msra.mxu0 0
  %1559 = vmatprep.subr.bf16.mxu0 0
  %1560 = vmatpush1.bf16.msra.mxu0 0
  %1561 = vmatprep.mubr.bf16.mxu0 0
  %1562 = vmatmul.mubr.bf16.gmra.mrb[0].mxu0 %v1527
  %v1563 = vpop.f32.mrb[0].mxu0
  %v1564 = vadd.f32 %v1500, %v1563
  %v1565 = vpop.f32.mrb[0].mxu0
  %v1566 = vpop.f32.mrb[0].mxu0
  %v1567 = vadd.f32 %v1500, %v1566
  %v1568 = vpop.f32.mrb[0].mxu0
  %1569 = vdwg.mxu0
  %v1570 = vadd.f32 %v1564, %v1358
  %v1571 = vadd.f32 %v1567, %v1359
  %s1572 = scalar_lea.vmem %s12, 1
  %v1573 = vld [vmem:[%s1572] sm:$0x1]
  %s1574 = scalar_lea.vmem %s13, 1
  %v1575 = vld [vmem:[%s1574] sm:$0x1]
  %v1576 = vsel %vm82, %v1570, 0.0
  %1577 = vadd.xlane.f32.xlu0 %v1576
  %v1578 = vpop.xlane.xlu0 %1577
  %v1579 = vsel %vm82, %v1571, 0.0
  %1580 = vadd.xlane.f32.xlu0 %v1579
  %v1581 = vpop.xlane.xlu0 %1580
  %v1582 = vmul.f32 %v1578, %v545
  %v1583 = vmul.f32 %v1581, %v545
  %v1584 = vsub.f32 %v1570, %v1582
  %v1585 = vsub.f32 %v1571, %v1583
  %v1586 = vmul.f32 %v1584, %v1584
  %v1587 = vmul.f32 %v1585, %v1585
  %v1588 = vsel %vm82, %v1586, 0.0
  %1589 = vadd.xlane.f32.xlu0 %v1588
  %v1590 = vpop.xlane.xlu0 %1589
  %v1591 = vsel %vm82, %v1587, 0.0
  %1592 = vadd.xlane.f32.xlu0 %v1591
  %v1593 = vpop.xlane.xlu0 %1592
  %v1594 = vmul.f32 %v1590, %v545
  %v1595 = vmul.f32 %v1593, %v545
  %v1596 = vadd.f32 %v1594, 1e-05
  %v1597 = vadd.f32 %v1595, 1e-05
  %v1598 = vrsqrt.pop %v1596
  %v1599 = vrsqrt.pop %v1597
  %v1600 = vmul.f32 %v1584, %v1598
  %v1601 = vmul.f32 %v1585, %v1599
  %v1603 = vlaneseq
  %v1604 = vshrl.u32 %v1603, 7
  %v1605 = vsub.s32 0, %v1604
  %v1606 = vrot.slane %v1573, %v1605
  %v1608 = vmul.f32 %v1606, %v1600
  %v1609 = vmul.f32 %v1606, %v1601
  %v1611 = vlaneseq
  %v1612 = vshrl.u32 %v1611, 7
  %v1613 = vsub.s32 0, %v1612
  %v1614 = vrot.slane %v1575, %v1613
  %v1616 = vadd.f32 %v1608, %v1614
  %v1617 = vadd.f32 %v1609, %v1614
  %s1618 = scalar_lea.vmem %s14, 16
  %1619 = vst.msk [vmem:[%s1618] sm:$0xff] %vm82, %v1616
  %1620 = vst.msk [vmem:[%s1618 + $0x8] sm:$0xff] %vm82, %v1617
  // Predicated region
  $region58: #{bert_encoder_pallas.1} parent=0 // pred_check
    _
  $region59: #{bert_encoder_pallas.1} parent=0 // pred_check_branch
    %1622 = sbr.rel (0) target = $region61
  $region60: #{bert_encoder_pallas.1} parent=0 // pred_region
    _
  $region61: #{bert_encoder_pallas.1} parent=0 // pred_fallthru
    _
  // Predicated region
  $region62: #{bert_encoder_pallas.1} parent=0 // pred_check
    _
  $region63: #{bert_encoder_pallas.1} parent=0 // pred_check_branch
    %1624 = sbr.rel (0) target = $region65
  $region64: #{bert_encoder_pallas.1} parent=0 // pred_region
    _
  $region65: #{bert_encoder_pallas.1} parent=0 // pred_fallthru
    _

</llo_original>
